<compile_context>
chip_gen: v7x
topology: tpu7x:2x2x1
jax: 0.10.0
libtpu: 0.0.40
codegen_flags: <defaults>
</compile_context>

<pallas_src>
import functools

import jax
import jax.numpy as jnp
from jax.experimental import pallas as pl
from jax.experimental.pallas import tpu as pltpu


def _round_up(x, m):
    return (x + m - 1) // m * m


def _compute_pad(k, s, size):
    # Exact re-implementation of Unit3D.compute_pad
    if size % s == 0:
        return max(k - s, 0)
    return max(k - size % s, 0)


# ----------------------------- Pallas kernels ------------------------------

def _conv_bnstats_kernel(x_ref, w_ref, mask_ref, o_ref, sum_ref, sq_ref,
                         acc_ref, *, kh, kw, sh, sw, wq, rows_out):
    """One (n, t_out) output frame x one temporal tap per grid step.

    x_ref   : (sh*sw, ROWS, C_in)   bf16  padded input frame (phase-major rows)
    w_ref   : (kt*kh*kw, C_in, Cp)  bf16  all conv taps, VMEM-resident
    mask_ref: (rows_out, 1)         f32   1.0 where the output column is valid
    o_ref   : (rows_out, Cp)        bf16  conv output for this frame
    sum_ref : (1, Cp)               f32   per-frame BN partial sum
    sq_ref  : (1, Cp)               f32   per-frame BN partial sum of squares
    acc_ref : (rows_out, Cp)        f32   scratch accumulator (persists over kt)
    """
    i = pl.program_id(2)          # temporal tap index
    kt = pl.num_programs(2)

    @pl.when(i == 0)
    def _():
        acc_ref[...] = jnp.zeros_like(acc_ref)

    # Accumulate all kh*kw spatial taps of temporal tap i on the MXU.
    part = None
    for j in range(kh):
        ph, qj = j % sh, j // sh
        for k in range(kw):
            pw, qk = k % sw, k // sw
            lhs = x_ref[ph * sw + pw, pl.ds(qj * wq + qk, rows_out), :]
            wt = w_ref[i * (kh * kw) + j * kw + k]
            d = jnp.dot(lhs, wt, preferred_element_type=jnp.float32)
            part = d if part is None else part + d
    acc_ref[...] += part

    @pl.when(i == kt - 1)
    def _():
        acc = acc_ref[...]
        o_ref[...] = acc.astype(o_ref.dtype)
        m = mask_ref[...]
        # Fused BN statistics (only over valid output columns).
        sum_ref[...] = jnp.sum(acc * m, axis=0, keepdims=True)
        sq_ref[...] = jnp.sum(acc * acc * m, axis=0, keepdims=True)


def _bn_relu_kernel(x_ref, scale_ref, shift_ref, o_ref):
    # Fused normalize + affine + ReLU with precomputed scale / shift.
    x = x_ref[...].astype(jnp.float32)
    o_ref[...] = jnp.maximum(x * scale_ref[...] + shift_ref[...], 0.0)


# ------------------------------ host wrapper -------------------------------

def unit3d_forward(x, weight, gamma, beta, *, kernel_shape, stride,
                   eps=1e-3, tm_bn=512):
    """Unit3D forward. x: (N, C_in, T, H, W) f32; weight: (C_out, C_in, kt, kh, kw)."""
    n, c_in, t, h, w_sp = x.shape
    c_out, c_in_w, kt, kh, kw = weight.shape
    assert c_in == c_in_w and (kt, kh, kw) == tuple(kernel_shape)
    st, sh, sw = stride

    out_t = -(-t // st)
    out_h = -(-h // sh)
    out_w = -(-w_sp // sw)

    pad_t = _compute_pad(kt, st, t)
    pad_h = _compute_pad(kh, sh, h)
    pad_w = _compute_pad(kw, sw, w_sp)
    tp = t + pad_t

    # ---- host glue: TF-SAME pad + channels-last, spatial-phase-major layout ----
    hq = -(-(h + pad_h) // sh)
    wq = -(-(w_sp + pad_w) // sw)
    xp = jnp.pad(x, [(0, 0), (0, 0),
                     (pad_t // 2, pad_t - pad_t // 2),
                     (pad_h // 2, (sh * hq - (h + pad_h)) + pad_h - pad_h // 2),
                     (pad_w // 2, (sw * wq - (w_sp + pad_w)) + pad_w - pad_w // 2)])
    # (N, C, Tp, sh*Hq, sw*Wq) -> (N, Tp, sh*sw, Hq*Wq, C_in)
    xr = xp.reshape(n, c_in, tp, hq, sh, wq, sw)
    xr = jnp.transpose(xr, (0, 2, 4, 6, 3, 5, 1))
    xr = xr.reshape(n, tp, sh * sw, hq * wq, c_in)

    rows_out = out_h * wq                          # matmul rows per output frame
    rows_in = max(hq * wq,
                  ((kh - 1) // sh) * wq + (kw - 1) // sw + rows_out)
    rows_in = _round_up(rows_in, 8)
    if rows_in > hq * wq:
        xr = jnp.pad(xr, [(0, 0), (0, 0), (0, 0), (0, rows_in - hq * wq), (0, 0)])
    xr = xr.astype(jnp.bfloat16)

    # Weights: (C_out, C_in, kt, kh, kw) -> (kt*kh*kw, C_in, Cp), bf16, lane-padded.
    cp = _round_up(c_out, 128)
    w_r = jnp.transpose(weight, (2, 3, 4, 1, 0)).reshape(kt * kh * kw, c_in, c_out)
    w_r = jnp.pad(w_r, [(0, 0), (0, 0), (0, cp - c_out)]).astype(jnp.bfloat16)

    # Valid-output-column mask (wo < out_w) used for the fused BN statistics.
    mask = ((jnp.arange(rows_out) % wq) < out_w).astype(jnp.float32)
    mask = mask.reshape(rows_out, 1)

    f = n * out_t                                  # number of output frames

    conv_kernel = functools.partial(
        _conv_bnstats_kernel, kh=kh, kw=kw, sh=sh, sw=sw, wq=wq,
        rows_out=rows_out)

    conv_out, psum, psq = pl.pallas_call(
        conv_kernel,
        out_shape=(jax.ShapeDtypeStruct((n, out_t, rows_out, cp), jnp.bfloat16),
                   jax.ShapeDtypeStruct((n, out_t, 1, cp), jnp.float32),
                   jax.ShapeDtypeStruct((n, out_t, 1, cp), jnp.float32)),
        grid=(n, out_t, kt),
        in_specs=[
            # one padded input frame per (n, t_out, temporal tap)
            pl.BlockSpec((None, None, sh * sw, rows_in, c_in),
                         lambda b, to, i: (b, to * st + i, 0, 0, 0)),
            # full weight, resident (constant block index -> fetched once)
            pl.BlockSpec((kt * kh * kw, c_in, cp), lambda b, to, i: (0, 0, 0)),
            pl.BlockSpec((rows_out, 1), lambda b, to, i: (0, 0)),
        ],
        out_specs=(
            pl.BlockSpec((None, None, rows_out, cp), lambda b, to, i: (b, to, 0, 0)),
            pl.BlockSpec((None, None, 1, cp), lambda b, to, i: (b, to, 0, 0)),
            pl.BlockSpec((None, None, 1, cp), lambda b, to, i: (b, to, 0, 0)),
        ),
        scratch_shapes=[pltpu.VMEM((rows_out, cp), jnp.float32)],
        compiler_params=pltpu.CompilerParams(
            dimension_semantics=("parallel", "parallel", "arbitrary"),
            vmem_limit_bytes=32 * 1024 * 1024),
    )(xr, w_r, mask)

    # ---- BN statistics: tiny (frames, C) partial reduce in the wrapper ----
    count = float(n * out_t * out_h * out_w)
    tot = jnp.sum(psum.reshape(f, cp), axis=0)
    tot_sq = jnp.sum(psq.reshape(f, cp), axis=0)
    mean = tot / count
    var = jnp.maximum(tot_sq / count - mean * mean, 0.0)
    # TODO(synk): running_mean/running_var momentum updates (BN buffers) are
    # training-state bookkeeping and do not affect the forward output; omitted.
    gamma_p = jnp.pad(gamma.astype(jnp.float32), (0, cp - c_out))
    beta_p = jnp.pad(beta.astype(jnp.float32), (0, cp - c_out))
    g_inv = gamma_p * jax.lax.rsqrt(var + eps)
    scale = g_inv.reshape(1, cp)
    shift = (beta_p - mean * g_inv).reshape(1, cp)

    # ---- fused normalize + affine + ReLU over lane-dense rows ----
    rows = f * rows_out
    x2d = conv_out.reshape(rows, cp)
    tm = tm_bn if rows >= tm_bn else rows
    out2d = pl.pallas_call(
        _bn_relu_kernel,
        out_shape=jax.ShapeDtypeStruct((rows, cp), jnp.float32),
        grid=(pl.cdiv(rows, tm),),
        in_specs=[pl.BlockSpec((tm, cp), lambda r: (r, 0)),
                  pl.BlockSpec((1, cp), lambda r: (0, 0)),
                  pl.BlockSpec((1, cp), lambda r: (0, 0))],
        out_specs=pl.BlockSpec((tm, cp), lambda r: (r, 0)),
        compiler_params=pltpu.CompilerParams(
            dimension_semantics=("parallel",)),
    )(x2d, scale, shift)

    y = out2d.reshape(n, out_t, out_h, wq, cp)[:, :, :, :out_w, :c_out]
    return jnp.transpose(y, (0, 4, 1, 2, 3))       # back to NCTHW


# ------------------------------- reference ---------------------------------

def unit3d_reference(x, weight, gamma, beta, *, stride, eps=1e-3):
    """Pure-JAX reference mirroring the PyTorch forward (training-mode BN)."""
    kt, kh, kw = weight.shape[2:]
    st, sh, sw = stride
    t, h, w_sp = x.shape[2:]
    pad_t = _compute_pad(kt, st, t)
    pad_h = _compute_pad(kh, sh, h)
    pad_w = _compute_pad(kw, sw, w_sp)
    pad = [(pad_t // 2, pad_t - pad_t // 2),
           (pad_h // 2, pad_h - pad_h // 2),
           (pad_w // 2, pad_w - pad_w // 2)]
    y = jax.lax.conv_general_dilated(
        x, weight, window_strides=stride, padding=pad,
        dimension_numbers=("NCDHW", "OIDHW", "NCDHW"))
    mu = jnp.mean(y, axis=(0, 2, 3, 4), keepdims=True)
    var = jnp.mean((y - mu) ** 2, axis=(0, 2, 3, 4), keepdims=True)
    y = (y - mu) * jax.lax.rsqrt(var + eps)
    y = y * gamma[None, :, None, None, None] + beta[None, :, None, None, None]
    return jnp.maximum(y, 0.0)


if __name__ == "__main__":
    key = jax.random.PRNGKey(0)
    k1, k2, k3, k4 = jax.random.split(key, 4)

    # Small shapes consistent with the module's 5-D NCTHW input.
    N, C_IN, T, H, W = 2, 4, 4, 8, 8
    C_OUT = 8
    KSHAPE = (3, 3, 3)
    STRIDE = (1, 1, 1)

    x = jax.random.normal(k1, (N, C_IN, T, H, W), jnp.float32)
    weight = 0.1 * jax.random.normal(k2, (C_OUT, C_IN) + KSHAPE, jnp.float32)
    gamma = 1.0 + 0.1 * jax.random.normal(k3, (C_OUT,), jnp.float32)
    beta = 0.1 * jax.random.normal(k4, (C_OUT,), jnp.float32)

    y = unit3d_forward(x, weight, gamma, beta,
                       kernel_shape=KSHAPE, stride=STRIDE, eps=1e-3)
    y = jax.block_until_ready(y)
    assert y.shape == (N, C_OUT, T, H, W), y.shape

    y_ref = unit3d_reference(x, weight, gamma, beta, stride=STRIDE, eps=1e-3)
    # bf16 MXU operands + bf16 conv intermediate -> loosen vs f32 reference.
    err = float(jnp.max(jnp.abs(y - y_ref)))
    assert err < 1e-1, err

    print("KERNEL_OK")
</pallas_src>

<mosaic_0001>
module attributes {stable_mosaic.version = 11 : i64} {
  func.func @_conv_bnstats_kernel(%arg0: i32, %arg1: i32, %arg2: i32, %arg3: memref<1x1x1x104x4xbf16, #tpu.memory_space<vmem>>, %arg4: memref<27x4x128xbf16, #tpu.memory_space<vmem>>, %arg5: memref<80x1xf32, #tpu.memory_space<vmem>>, %arg6: memref<1x1x80x128xbf16, #tpu.memory_space<vmem>>, %arg7: memref<1x1x1x128xf32, #tpu.memory_space<vmem>>, %arg8: memref<1x1x1x128xf32, #tpu.memory_space<vmem>>, %arg9: memref<80x128xf32, #tpu.memory_space<vmem>>) attributes {dimension_semantics = [#tpu.dimension_semantics<parallel>, #tpu.dimension_semantics<parallel>, #tpu.dimension_semantics<arbitrary>], iteration_bounds = array<i64: 2, 4, 3>, scalar_prefetch = 0 : i64, scratch_operands = 1 : i64, tpu.core_type = #tpu.core_type<tc>, window_params = [{transform_indices = @transform_0, window_bounds = array<i64: 1, 1, 1, 104, 4>}, {pipeline_mode = #tpu.pipeline_mode<synchronous>, transform_indices = @transform_1, window_bounds = array<i64: 27, 4, 128>}, {pipeline_mode = #tpu.pipeline_mode<synchronous>, transform_indices = @transform_2, window_bounds = array<i64: 80, 1>}, {transform_indices = @transform_3, window_bounds = array<i64: 1, 1, 80, 128>}, {transform_indices = @transform_4, window_bounds = array<i64: 1, 1, 1, 128>}, {transform_indices = @transform_5, window_bounds = array<i64: 1, 1, 1, 128>}]} {
    %c0_i32 = arith.constant 0 : i32
    %0 = arith.cmpi eq, %arg2, %c0_i32 : i32
    %1 = arith.extui %0 : i1 to i32
    %c0_i32_0 = arith.constant 0 : i32
    %2 = arith.cmpi ne, %1, %c0_i32_0 : i32
    scf.if %2 {
      %cst_91 = arith.constant 0.000000e+00 : f32
      %98 = vector.broadcast %cst_91 : f32 to vector<80x128xf32>
      %c0_92 = arith.constant 0 : index
      %c0_93 = arith.constant 0 : index
      %99 = vector.load %arg9[%c0_92, %c0_93] : memref<80x128xf32, #tpu.memory_space<vmem>>, vector<80x128xf32>
      tpu.vector_store %arg9[%c0_92, %c0_93], %98 {strides = array<i32>} : memref<80x128xf32, #tpu.memory_space<vmem>>, vector<80x128xf32>,
    } else {
    }
    %c0 = arith.constant 0 : index
    %c0_1 = arith.constant 0 : index
    %c0_2 = arith.constant 0 : index
    %c0_3 = arith.constant 0 : index
    %c0_4 = arith.constant 0 : index
    %3 = vector.load %arg3[%c0, %c0_1, %c0_2, %c0_3, %c0_4] : memref<1x1x1x104x4xbf16, #tpu.memory_space<vmem>>, vector<1x1x1x80x4xbf16>
    %4 = vector.shape_cast %3 : vector<1x1x1x80x4xbf16> to vector<80x4xbf16>
    %c9_i32 = arith.constant 9 : i32
    %5 = arith.muli %arg2, %c9_i32 : i32
    %c0_i32_5 = arith.constant 0 : i32
    %6 = arith.addi %5, %c0_i32_5 : i32
    %c0_i32_6 = arith.constant 0 : i32
    %7 = arith.addi %6, %c0_i32_6 : i32
    %8 = arith.index_cast %7 : i32 to index
    %c0_7 = arith.constant 0 : index
    %c0_8 = arith.constant 0 : index
    %9 = vector.load %arg4[%8, %c0_7, %c0_8] : memref<27x4x128xbf16, #tpu.memory_space<vmem>>, vector<1x4x128xbf16>
    %10 = vector.shape_cast %9 : vector<1x4x128xbf16> to vector<4x128xbf16>
    %cst = arith.constant dense<0.000000e+00> : vector<80x128xf32>
    %11 = tpu.matmul %4, %10, %cst {dimension_numbers = #tpu.dot_dimension_numbers<[1], [0], [0], [1], [0, 0, 1, 1], [], []>} : vector<80x4xbf16>, vector<4x128xbf16>, vector<80x128xf32> -> vector<80x128xf32>
    %c0_9 = arith.constant 0 : index
    %c0_10 = arith.constant 0 : index
    %c0_11 = arith.constant 0 : index
    %c1 = arith.constant 1 : index
    %c0_12 = arith.constant 0 : index
    %12 = vector.load %arg3[%c0_9, %c0_10, %c0_11, %c1, %c0_12] : memref<1x1x1x104x4xbf16, #tpu.memory_space<vmem>>, vector<1x1x1x80x4xbf16>
    %13 = vector.shape_cast %12 : vector<1x1x1x80x4xbf16> to vector<80x4xbf16>
    %c9_i32_13 = arith.constant 9 : i32
    %14 = arith.muli %arg2, %c9_i32_13 : i32
    %c0_i32_14 = arith.constant 0 : i32
    %15 = arith.addi %14, %c0_i32_14 : i32
    %c1_i32 = arith.constant 1 : i32
    %16 = arith.addi %15, %c1_i32 : i32
    %17 = arith.index_cast %16 : i32 to index
    %c0_15 = arith.constant 0 : index
    %c0_16 = arith.constant 0 : index
    %18 = vector.load %arg4[%17, %c0_15, %c0_16] : memref<27x4x128xbf16, #tpu.memory_space<vmem>>, vector<1x4x128xbf16>
    %19 = vector.shape_cast %18 : vector<1x4x128xbf16> to vector<4x128xbf16>
    %cst_17 = arith.constant dense<0.000000e+00> : vector<80x128xf32>
    %20 = tpu.matmul %13, %19, %cst_17 {dimension_numbers = #tpu.dot_dimension_numbers<[1], [0], [0], [1], [0, 0, 1, 1], [], []>} : vector<80x4xbf16>, vector<4x128xbf16>, vector<80x128xf32> -> vector<80x128xf32>
    %21 = arith.addf %11, %20 : vector<80x128xf32>
    %c0_18 = arith.constant 0 : index
    %c0_19 = arith.constant 0 : index
    %c0_20 = arith.constant 0 : index
    %c2 = arith.constant 2 : index
    %c0_21 = arith.constant 0 : index
    %22 = vector.load %arg3[%c0_18, %c0_19, %c0_20, %c2, %c0_21] : memref<1x1x1x104x4xbf16, #tpu.memory_space<vmem>>, vector<1x1x1x80x4xbf16>
    %23 = vector.shape_cast %22 : vector<1x1x1x80x4xbf16> to vector<80x4xbf16>
    %c9_i32_22 = arith.constant 9 : i32
    %24 = arith.muli %arg2, %c9_i32_22 : i32
    %c0_i32_23 = arith.constant 0 : i32
    %25 = arith.addi %24, %c0_i32_23 : i32
    %c2_i32 = arith.constant 2 : i32
    %26 = arith.addi %25, %c2_i32 : i32
    %27 = arith.index_cast %26 : i32 to index
    %c0_24 = arith.constant 0 : index
    %c0_25 = arith.constant 0 : index
    %28 = vector.load %arg4[%27, %c0_24, %c0_25] : memref<27x4x128xbf16, #tpu.memory_space<vmem>>, vector<1x4x128xbf16>
    %29 = vector.shape_cast %28 : vector<1x4x128xbf16> to vector<4x128xbf16>
    %cst_26 = arith.constant dense<0.000000e+00> : vector<80x128xf32>
    %30 = tpu.matmul %23, %29, %cst_26 {dimension_numbers = #tpu.dot_dimension_numbers<[1], [0], [0], [1], [0, 0, 1, 1], [], []>} : vector<80x4xbf16>, vector<4x128xbf16>, vector<80x128xf32> -> vector<80x128xf32>
    %31 = arith.addf %21, %30 : vector<80x128xf32>
    %c0_27 = arith.constant 0 : index
    %c0_28 = arith.constant 0 : index
    %c0_29 = arith.constant 0 : index
    %c10 = arith.constant 10 : index
    %c0_30 = arith.constant 0 : index
    %32 = vector.load %arg3[%c0_27, %c0_28, %c0_29, %c10, %c0_30] : memref<1x1x1x104x4xbf16, #tpu.memory_space<vmem>>, vector<1x1x1x80x4xbf16>
    %33 = vector.shape_cast %32 : vector<1x1x1x80x4xbf16> to vector<80x4xbf16>
    %c9_i32_31 = arith.constant 9 : i32
    %34 = arith.muli %arg2, %c9_i32_31 : i32
    %c3_i32 = arith.constant 3 : i32
    %35 = arith.addi %34, %c3_i32 : i32
    %c0_i32_32 = arith.constant 0 : i32
    %36 = arith.addi %35, %c0_i32_32 : i32
    %37 = arith.index_cast %36 : i32 to index
    %c0_33 = arith.constant 0 : index
    %c0_34 = arith.constant 0 : index
    %38 = vector.load %arg4[%37, %c0_33, %c0_34] : memref<27x4x128xbf16, #tpu.memory_space<vmem>>, vector<1x4x128xbf16>
    %39 = vector.shape_cast %38 : vector<1x4x128xbf16> to vector<4x128xbf16>
    %cst_35 = arith.constant dense<0.000000e+00> : vector<80x128xf32>
    %40 = tpu.matmul %33, %39, %cst_35 {dimension_numbers = #tpu.dot_dimension_numbers<[1], [0], [0], [1], [0, 0, 1, 1], [], []>} : vector<80x4xbf16>, vector<4x128xbf16>, vector<80x128xf32> -> vector<80x128xf32>
    %41 = arith.addf %31, %40 : vector<80x128xf32>
    %c0_36 = arith.constant 0 : index
    %c0_37 = arith.constant 0 : index
    %c0_38 = arith.constant 0 : index
    %c11 = arith.constant 11 : index
    %c0_39 = arith.constant 0 : index
    %42 = vector.load %arg3[%c0_36, %c0_37, %c0_38, %c11, %c0_39] : memref<1x1x1x104x4xbf16, #tpu.memory_space<vmem>>, vector<1x1x1x80x4xbf16>
    %43 = vector.shape_cast %42 : vector<1x1x1x80x4xbf16> to vector<80x4xbf16>
    %c9_i32_40 = arith.constant 9 : i32
    %44 = arith.muli %arg2, %c9_i32_40 : i32
    %c3_i32_41 = arith.constant 3 : i32
    %45 = arith.addi %44, %c3_i32_41 : i32
    %c1_i32_42 = arith.constant 1 : i32
    %46 = arith.addi %45, %c1_i32_42 : i32
    %47 = arith.index_cast %46 : i32 to index
    %c0_43 = arith.constant 0 : index
    %c0_44 = arith.constant 0 : index
    %48 = vector.load %arg4[%47, %c0_43, %c0_44] : memref<27x4x128xbf16, #tpu.memory_space<vmem>>, vector<1x4x128xbf16>
    %49 = vector.shape_cast %48 : vector<1x4x128xbf16> to vector<4x128xbf16>
    %cst_45 = arith.constant dense<0.000000e+00> : vector<80x128xf32>
    %50 = tpu.matmul %43, %49, %cst_45 {dimension_numbers = #tpu.dot_dimension_numbers<[1], [0], [0], [1], [0, 0, 1, 1], [], []>} : vector<80x4xbf16>, vector<4x128xbf16>, vector<80x128xf32> -> vector<80x128xf32>
    %51 = arith.addf %41, %50 : vector<80x128xf32>
    %c0_46 = arith.constant 0 : index
    %c0_47 = arith.constant 0 : index
    %c0_48 = arith.constant 0 : index
    %c12 = arith.constant 12 : index
    %c0_49 = arith.constant 0 : index
    %52 = vector.load %arg3[%c0_46, %c0_47, %c0_48, %c12, %c0_49] : memref<1x1x1x104x4xbf16, #tpu.memory_space<vmem>>, vector<1x1x1x80x4xbf16>
    %53 = vector.shape_cast %52 : vector<1x1x1x80x4xbf16> to vector<80x4xbf16>
    %c9_i32_50 = arith.constant 9 : i32
    %54 = arith.muli %arg2, %c9_i32_50 : i32
    %c3_i32_51 = arith.constant 3 : i32
    %55 = arith.addi %54, %c3_i32_51 : i32
    %c2_i32_52 = arith.constant 2 : i32
    %56 = arith.addi %55, %c2_i32_52 : i32
    %57 = arith.index_cast %56 : i32 to index
    %c0_53 = arith.constant 0 : index
    %c0_54 = arith.constant 0 : index
    %58 = vector.load %arg4[%57, %c0_53, %c0_54] : memref<27x4x128xbf16, #tpu.memory_space<vmem>>, vector<1x4x128xbf16>
    %59 = vector.shape_cast %58 : vector<1x4x128xbf16> to vector<4x128xbf16>
    %cst_55 = arith.constant dense<0.000000e+00> : vector<80x128xf32>
    %60 = tpu.matmul %53, %59, %cst_55 {dimension_numbers = #tpu.dot_dimension_numbers<[1], [0], [0], [1], [0, 0, 1, 1], [], []>} : vector<80x4xbf16>, vector<4x128xbf16>, vector<80x128xf32> -> vector<80x128xf32>
    %61 = arith.addf %51, %60 : vector<80x128xf32>
    %c0_56 = arith.constant 0 : index
    %c0_57 = arith.constant 0 : index
    %c0_58 = arith.constant 0 : index
    %c20 = arith.constant 20 : index
    %c0_59 = arith.constant 0 : index
    %62 = vector.load %arg3[%c0_56, %c0_57, %c0_58, %c20, %c0_59] : memref<1x1x1x104x4xbf16, #tpu.memory_space<vmem>>, vector<1x1x1x80x4xbf16>
    %63 = vector.shape_cast %62 : vector<1x1x1x80x4xbf16> to vector<80x4xbf16>
    %c9_i32_60 = arith.constant 9 : i32
    %64 = arith.muli %arg2, %c9_i32_60 : i32
    %c6_i32 = arith.constant 6 : i32
    %65 = arith.addi %64, %c6_i32 : i32
    %c0_i32_61 = arith.constant 0 : i32
    %66 = arith.addi %65, %c0_i32_61 : i32
    %67 = arith.index_cast %66 : i32 to index
    %c0_62 = arith.constant 0 : index
    %c0_63 = arith.constant 0 : index
    %68 = vector.load %arg4[%67, %c0_62, %c0_63] : memref<27x4x128xbf16, #tpu.memory_space<vmem>>, vector<1x4x128xbf16>
    %69 = vector.shape_cast %68 : vector<1x4x128xbf16> to vector<4x128xbf16>
    %cst_64 = arith.constant dense<0.000000e+00> : vector<80x128xf32>
    %70 = tpu.matmul %63, %69, %cst_64 {dimension_numbers = #tpu.dot_dimension_numbers<[1], [0], [0], [1], [0, 0, 1, 1], [], []>} : vector<80x4xbf16>, vector<4x128xbf16>, vector<80x128xf32> -> vector<80x128xf32>
    %71 = arith.addf %61, %70 : vector<80x128xf32>
    %c0_65 = arith.constant 0 : index
    %c0_66 = arith.constant 0 : index
    %c0_67 = arith.constant 0 : index
    %c21 = arith.constant 21 : index
    %c0_68 = arith.constant 0 : index
    %72 = vector.load %arg3[%c0_65, %c0_66, %c0_67, %c21, %c0_68] : memref<1x1x1x104x4xbf16, #tpu.memory_space<vmem>>, vector<1x1x1x80x4xbf16>
    %73 = vector.shape_cast %72 : vector<1x1x1x80x4xbf16> to vector<80x4xbf16>
    %c9_i32_69 = arith.constant 9 : i32
    %74 = arith.muli %arg2, %c9_i32_69 : i32
    %c6_i32_70 = arith.constant 6 : i32
    %75 = arith.addi %74, %c6_i32_70 : i32
    %c1_i32_71 = arith.constant 1 : i32
    %76 = arith.addi %75, %c1_i32_71 : i32
    %77 = arith.index_cast %76 : i32 to index
    %c0_72 = arith.constant 0 : index
    %c0_73 = arith.constant 0 : index
    %78 = vector.load %arg4[%77, %c0_72, %c0_73] : memref<27x4x128xbf16, #tpu.memory_space<vmem>>, vector<1x4x128xbf16>
    %79 = vector.shape_cast %78 : vector<1x4x128xbf16> to vector<4x128xbf16>
    %cst_74 = arith.constant dense<0.000000e+00> : vector<80x128xf32>
    %80 = tpu.matmul %73, %79, %cst_74 {dimension_numbers = #tpu.dot_dimension_numbers<[1], [0], [0], [1], [0, 0, 1, 1], [], []>} : vector<80x4xbf16>, vector<4x128xbf16>, vector<80x128xf32> -> vector<80x128xf32>
    %81 = arith.addf %71, %80 : vector<80x128xf32>
    %c0_75 = arith.constant 0 : index
    %c0_76 = arith.constant 0 : index
    %c0_77 = arith.constant 0 : index
    %c22 = arith.constant 22 : index
    %c0_78 = arith.constant 0 : index
    %82 = vector.load %arg3[%c0_75, %c0_76, %c0_77, %c22, %c0_78] : memref<1x1x1x104x4xbf16, #tpu.memory_space<vmem>>, vector<1x1x1x80x4xbf16>
    %83 = vector.shape_cast %82 : vector<1x1x1x80x4xbf16> to vector<80x4xbf16>
    %c9_i32_79 = arith.constant 9 : i32
    %84 = arith.muli %arg2, %c9_i32_79 : i32
    %c6_i32_80 = arith.constant 6 : i32
    %85 = arith.addi %84, %c6_i32_80 : i32
    %c2_i32_81 = arith.constant 2 : i32
    %86 = arith.addi %85, %c2_i32_81 : i32
    %87 = arith.index_cast %86 : i32 to index
    %c0_82 = arith.constant 0 : index
    %c0_83 = arith.constant 0 : index
    %88 = vector.load %arg4[%87, %c0_82, %c0_83] : memref<27x4x128xbf16, #tpu.memory_space<vmem>>, vector<1x4x128xbf16>
    %89 = vector.shape_cast %88 : vector<1x4x128xbf16> to vector<4x128xbf16>
    %cst_84 = arith.constant dense<0.000000e+00> : vector<80x128xf32>
    %90 = tpu.matmul %83, %89, %cst_84 {dimension_numbers = #tpu.dot_dimension_numbers<[1], [0], [0], [1], [0, 0, 1, 1], [], []>} : vector<80x4xbf16>, vector<4x128xbf16>, vector<80x128xf32> -> vector<80x128xf32>
    %91 = arith.addf %81, %90 : vector<80x128xf32>
    %c0_85 = arith.constant 0 : index
    %c0_86 = arith.constant 0 : index
    %92 = vector.load %arg9[%c0_85, %c0_86] : memref<80x128xf32, #tpu.memory_space<vmem>>, vector<80x128xf32>
    %93 = arith.addf %92, %91 : vector<80x128xf32>
    %c0_87 = arith.constant 0 : index
    %c0_88 = arith.constant 0 : index
    %94 = vector.load %arg9[%c0_87, %c0_88] : memref<80x128xf32, #tpu.memory_space<vmem>>, vector<80x128xf32>
    tpu.vector_store %arg9[%c0_87, %c0_88], %93 {strides = array<i32>} : memref<80x128xf32, #tpu.memory_space<vmem>>, vector<80x128xf32>,
    %c2_i32_89 = arith.constant 2 : i32
    %95 = arith.cmpi eq, %arg2, %c2_i32_89 : i32
    %96 = arith.extui %95 : i1 to i32
    %c0_i32_90 = arith.constant 0 : i32
    %97 = arith.cmpi ne, %96, %c0_i32_90 : i32
    scf.if %97 {
      %c0_91 = arith.constant 0 : index
      %c0_92 = arith.constant 0 : index
      %98 = vector.load %arg9[%c0_91, %c0_92] : memref<80x128xf32, #tpu.memory_space<vmem>>, vector<80x128xf32>
      %99 = arith.truncf %98 : vector<80x128xf32> to vector<80x128xbf16>
      %c0_93 = arith.constant 0 : index
      %c0_94 = arith.constant 0 : index
      %c0_95 = arith.constant 0 : index
      %c0_96 = arith.constant 0 : index
      %100 = vector.load %arg6[%c0_93, %c0_94, %c0_95, %c0_96] : memref<1x1x80x128xbf16, #tpu.memory_space<vmem>>, vector<1x1x80x128xbf16>
      %101 = vector.shape_cast %100 : vector<1x1x80x128xbf16> to vector<80x128xbf16>
      %102 = vector.shape_cast %99 : vector<80x128xbf16> to vector<1x1x80x128xbf16>
      tpu.vector_store %arg6[%c0_93, %c0_94, %c0_95, %c0_96], %102 {strides = array<i32>} : memref<1x1x80x128xbf16, #tpu.memory_space<vmem>>, vector<1x1x80x128xbf16>,
      %c0_97 = arith.constant 0 : index
      %c0_98 = arith.constant 0 : index
      %103 = vector.load %arg5[%c0_97, %c0_98] : memref<80x1xf32, #tpu.memory_space<vmem>>, vector<80x1xf32>
      %104 = vector.broadcast %103 : vector<80x1xf32> to vector<80x128xf32>
      %105 = arith.mulf %98, %104 : vector<80x128xf32>
      %cst_99 = arith.constant dense<0.000000e+00> : vector<128xf32>
      %106 = vector.multi_reduction <add>, %105, %cst_99 [0] : vector<80x128xf32> to vector<128xf32>
      %107 = vector.shape_cast %106 : vector<128xf32> to vector<1x128xf32>
      %c0_100 = arith.constant 0 : index
      %c0_101 = arith.constant 0 : index
      %c0_102 = arith.constant 0 : index
      %c0_103 = arith.constant 0 : index
      %108 = vector.load %arg7[%c0_100, %c0_101, %c0_102, %c0_103] : memref<1x1x1x128xf32, #tpu.memory_space<vmem>>, vector<1x1x1x128xf32>
      %109 = vector.shape_cast %108 : vector<1x1x1x128xf32> to vector<1x128xf32>
      %110 = vector.shape_cast %107 : vector<1x128xf32> to vector<1x1x1x128xf32>
      tpu.vector_store %arg7[%c0_100, %c0_101, %c0_102, %c0_103], %110 {strides = array<i32>} : memref<1x1x1x128xf32, #tpu.memory_space<vmem>>, vector<1x1x1x128xf32>,
      %111 = arith.mulf %98, %98 : vector<80x128xf32>
      %112 = vector.broadcast %103 : vector<80x1xf32> to vector<80x128xf32>
      %113 = arith.mulf %111, %112 : vector<80x128xf32>
      %cst_104 = arith.constant dense<0.000000e+00> : vector<128xf32>
      %114 = vector.multi_reduction <add>, %113, %cst_104 [0] : vector<80x128xf32> to vector<128xf32>
      %115 = vector.shape_cast %114 : vector<128xf32> to vector<1x128xf32>
      %c0_105 = arith.constant 0 : index
      %c0_106 = arith.constant 0 : index
      %c0_107 = arith.constant 0 : index
      %c0_108 = arith.constant 0 : index
      %116 = vector.load %arg8[%c0_105, %c0_106, %c0_107, %c0_108] : memref<1x1x1x128xf32, #tpu.memory_space<vmem>>, vector<1x1x1x128xf32>
      %117 = vector.shape_cast %116 : vector<1x1x1x128xf32> to vector<1x128xf32>
      %118 = vector.shape_cast %115 : vector<1x128xf32> to vector<1x1x1x128xf32>
      tpu.vector_store %arg8[%c0_105, %c0_106, %c0_107, %c0_108], %118 {strides = array<i32>} : memref<1x1x1x128xf32, #tpu.memory_space<vmem>>, vector<1x1x1x128xf32>,
    } else {
    }
    return
  }
  func.func @transform_0(%arg0: i32, %arg1: i32, %arg2: i32) -> (i32, i32, i32, i32, i32) {
    %c1_i32 = arith.constant 1 : i32
    %0 = arith.muli %arg1, %c1_i32 : i32
    %1 = arith.addi %0, %arg2 : i32
    %c0_i32 = arith.constant 0 : i32
    %c0_i32_0 = arith.constant 0 : i32
    %c0_i32_1 = arith.constant 0 : i32
    %c0_i32_2 = arith.constant 0 : i32
    return %arg0, %1, %c0_i32, %c0_i32_0, %c0_i32_1 : i32, i32, i32, i32, i32
  }
  func.func @transform_1(%arg0: i32, %arg1: i32, %arg2: i32) -> (i32, i32, i32) {
    %c0_i32 = arith.constant 0 : i32
    %c0_i32_0 = arith.constant 0 : i32
    %c0_i32_1 = arith.constant 0 : i32
    %c0_i32_2 = arith.constant 0 : i32
    return %c0_i32, %c0_i32_0, %c0_i32_1 : i32, i32, i32
  }
  func.func @transform_2(%arg0: i32, %arg1: i32, %arg2: i32) -> (i32, i32) {
    %c0_i32 = arith.constant 0 : i32
    %c0_i32_0 = arith.constant 0 : i32
    %c0_i32_1 = arith.constant 0 : i32
    return %c0_i32, %c0_i32_0 : i32, i32
  }
  func.func @transform_3(%arg0: i32, %arg1: i32, %arg2: i32) -> (i32, i32, i32, i32) {
    %c0_i32 = arith.constant 0 : i32
    %c0_i32_0 = arith.constant 0 : i32
    %c0_i32_1 = arith.constant 0 : i32
    return %arg0, %arg1, %c0_i32, %c0_i32_0 : i32, i32, i32, i32
  }
  func.func @transform_4(%arg0: i32, %arg1: i32, %arg2: i32) -> (i32, i32, i32, i32) {
    %c0_i32 = arith.constant 0 : i32
    %c0_i32_0 = arith.constant 0 : i32
    %c0_i32_1 = arith.constant 0 : i32
    return %arg0, %arg1, %c0_i32, %c0_i32_0 : i32, i32, i32, i32
  }
  func.func @transform_5(%arg0: i32, %arg1: i32, %arg2: i32) -> (i32, i32, i32, i32) {
    %c0_i32 = arith.constant 0 : i32
    %c0_i32_0 = arith.constant 0 : i32
    %c0_i32_1 = arith.constant 0 : i32
    return %arg0, %arg1, %c0_i32, %c0_i32_0 : i32, i32, i32, i32
  }
}

</mosaic_0001>

<llo_original>
// kernel: tpu_custom_call.1
$region0: #{tpu_custom_call.1}
  #allocation0 [shape = 'u32[]', space=smem, size = 0x4, offset = 0x4, fixed_abs, tag = 'smem constant byte address 0x4 - core index']
  #allocation1 [shape = 'u32[144,128]{1,0:T(1,128)}', space=vmem, size = 0x12000, scoped, tag = 'internal scratch']
  #allocation2 [shape = 'f32[80,128]{1,0:T(8,128)}', space=vmem, size = 0xa000, scoped, tag = 'scratch operand']
  %s0 = inlined_call_operand.vmem [shape: bf16[2,6,1,104,4], index: 0, kind: input, shape index: {}]
  %s1 = inlined_call_operand.vmem [shape: bf16[27,4,128], index: 1, kind: input, shape index: {}]
  %s2 = inlined_call_operand.vmem [shape: f32[80,1], index: 2, kind: input, shape index: {}]
  %s3 = inlined_call_operand.hbm [shape: bf16[2,4,80,128], index: 3, kind: output, shape index: {0}]
  %s4 = inlined_call_operand.hbm [shape: f32[2,4,1,128], index: 4, kind: output, shape index: {1}]
  %s5 = inlined_call_operand.hbm [shape: f32[2,4,1,128], index: 5, kind: output, shape index: {2}]
  %6 = xla_tuple %s3, %s4, %s5
  %s7 = sld [smem:[#allocation0]]
  $region69: #{tpu_custom_call.1} parent=0
    _
  %s9 = ssub.s32 1, %s7
  %s10 = scalar_select 0, %s9, %s7
  $region1: #{tpu_custom_call.1} parent=0
    #allocation3 [shape = 'u8[40960]{0}', space=vmem, size = 0xa000, scoped, tag = 'output window, operand 0']
    #allocation4 [shape = 's32[2]{0}', space=sflag, size = 0x8, scoped, tag = 'scoped memory for tpu_custom_call.1']
    #allocation5 [shape = 'u8[1024]{0}', space=vmem, size = 0x400, scoped, tag = 'output window, operand 1']
    #allocation6 [shape = 's32[2]{0}', space=sflag, size = 0x8, scoped, tag = 'scoped memory for tpu_custom_call.1']
    #allocation7 [shape = 'u8[1024]{0}', space=vmem, size = 0x400, scoped, tag = 'output window, operand 2']
    %11 = vsyncpa [#allocation4], 0
    %s12 = scalar_lea.sflag [#allocation4], 1
    %13 = vsyncpa %s12, 0
    %14 = vsyncpa [#allocation6], 0
    %s15 = scalar_lea.sflag [#allocation6], 1
    %16 = vsyncpa %s15, 0
    loop: start=0, step=1, limit=26
    $region2: #{tpu_custom_call.1} parent=1 // loop_pre_header
      _
    $region3: #{tpu_custom_call.1} parent=1 // loop_header
      %s18 = sphi 0, %s22
      %p19 = scmp.ge.s32.totalorder %s18, 26
      %s25 = sphi 0, %s44
      %s26 = sphi 0, %s40
      %s27 = sphi 0, %s36
      %s28 = sphi 0, %s25
      %s29 = sphi 0, %s26
      %s30 = sphi 0, %s27
      %s31 = sphi 0, %s28
      %s32 = sphi 0, %s29
      %s33 = sphi 0, %s30
      %s51 = sphi 0, %s53
      %s54 = sphi 0, %s51
      %s55 = sphi 0, %s54
      %s71 = sphi 0, %s55
      %s75 = sphi 0, %s75
      %s77 = sphi 0, %s75
      %s78 = sphi 0, %s77
      %s92 = sphi 0, %s78
      %s96 = sphi 0, %s96
      %s98 = sphi 0, %s96
      %s99 = sphi 0, %s98
      %s113 = sphi 0, %s99
      %s121 = sphi 0, %s123
      %s124 = sphi 0, %s121
      %s125 = sphi 0, %s124
      %s141 = sphi 0, %s125
      %s149 = sphi 0, %s151
      %s152 = sphi 0, %s149
      %s153 = sphi 0, %s152
      %s169 = sphi 0, %s153
      %s177 = sphi 0, %s179
      %s180 = sphi 0, %s177
      %s181 = sphi 0, %s180
      %s197 = sphi 0, %s181
    $region4: #{tpu_custom_call.1} parent=1 // loop_header_branch
      %21 = sbr.rel (%p19) target = $region8
    $region5: #{tpu_custom_call.1} parent=1 // loop_body
      %s23 = ssub.s32 %s18, 1
      %s24 = ssub.s32 %s18, 2
      %s34 = sadd.s32 1, %s27
      %p35 = scmp.ge.s32.totalorder %s34, 3
      %s36 = scalar_select %p35, 0, %s34
      %s37 = sadd.s32 1, %s26
      %s38 = scalar_select %p35, %s37, %s26
      %p39 = scmp.ge.s32.totalorder %s38, 4
      %s40 = scalar_select %p39, 0, %s38
      %s41 = sadd.s32 1, %s25
      %s42 = scalar_select %p39, %s41, %s25
      %p43 = scmp.ge.s32.totalorder %s42, 2
      %s44 = scalar_select %p43, 0, %s42
      %s45 = sadd.s32 %s26, %s27
      %s46 = sadd.s32 %s40, %s36
      %s47 = ssub.s32 %s25, %s44
      %s48 = ssub.s32 %s45, %s46
      %s49 = sor.u32 %s47, %s48
      %p50 = scmp.eq.s32.totalorder %s49, 0
      %s52 = sadd.s32 %s51, 1
      %s53 = scalar_select %p50, %s51, %s52
      %p56 = pneg %p50
      %p57 = scmp.eq.s32.totalorder %s18, 23
      %p58 = por %p56, %p57
      %p59 = scmp.ne.s32.totalorder %s51, %s54
      %p60 = scmp.eq.s32.totalorder %s18, 0
      %p61 = por %p59, %p60
      %p62 = scmp.ne.s32.totalorder %s51, %s54
      %p63 = scmp.eq.s32.totalorder %s23, 23
      %p64 = por %p62, %p63
      %p65 = scmp.ne.s32.totalorder %s54, %s55
      %p66 = scmp.eq.s32.totalorder %s23, 0
      %p67 = por %p65, %p66
      %p68 = scmp.ne.s32.totalorder %s54, %s55
      %p69 = scmp.eq.s32.totalorder %s24, 23
      %p70 = por %p68, %p69
      %p72 = scmp.ne.s32.totalorder %s55, %s71
      %p73 = scmp.eq.s32.totalorder %s24, 0
      %p74 = por %p72, %p73
      %s76 = sadd.s32 %s75, 1
      %p79 = scmp.eq.s32.totalorder %s18, 23
      %p80 = scmp.ne.s32.totalorder %s75, %s77
      %p81 = scmp.eq.s32.totalorder %s18, 0
      %p82 = por %p80, %p81
      %p83 = scmp.ne.s32.totalorder %s75, %s77
      %p84 = scmp.eq.s32.totalorder %s23, 23
      %p85 = por %p83, %p84
      %p86 = scmp.ne.s32.totalorder %s77, %s78
      %p87 = scmp.eq.s32.totalorder %s23, 0
      %p88 = por %p86, %p87
      %p89 = scmp.ne.s32.totalorder %s77, %s78
      %p90 = scmp.eq.s32.totalorder %s24, 23
      %p91 = por %p89, %p90
      %p93 = scmp.ne.s32.totalorder %s78, %s92
      %p94 = scmp.eq.s32.totalorder %s24, 0
      %p95 = por %p93, %p94
      %s97 = sadd.s32 %s96, 1
      %p100 = scmp.eq.s32.totalorder %s18, 23
      %p101 = scmp.ne.s32.totalorder %s96, %s98
      %p102 = scmp.eq.s32.totalorder %s18, 0
      %p103 = por %p101, %p102
      %p104 = scmp.ne.s32.totalorder %s96, %s98
      %p105 = scmp.eq.s32.totalorder %s23, 23
      %p106 = por %p104, %p105
      %p107 = scmp.ne.s32.totalorder %s98, %s99
      %p108 = scmp.eq.s32.totalorder %s23, 0
      %p109 = por %p107, %p108
      %p110 = scmp.ne.s32.totalorder %s98, %s99
      %p111 = scmp.eq.s32.totalorder %s24, 23
      %p112 = por %p110, %p111
      %p114 = scmp.ne.s32.totalorder %s99, %s113
      %p115 = scmp.eq.s32.totalorder %s24, 0
      %p116 = por %p114, %p115
      %s117 = ssub.s32 %s25, %s44
      %s118 = ssub.s32 %s26, %s40
      %s119 = sor.u32 %s117, %s118
      %p120 = scmp.eq.s32.totalorder %s119, 0
      %s122 = sadd.s32 %s121, 1
      %s123 = scalar_select %p120, %s121, %s122
      %p126 = pneg %p120
      %p127 = scmp.eq.s32.totalorder %s18, 23
      %p128 = por %p126, %p127
      %p129 = scmp.ne.s32.totalorder %s121, %s124
      %p130 = scmp.eq.s32.totalorder %s18, 0
      %p131 = por %p129, %p130
      %p132 = scmp.ne.s32.totalorder %s121, %s124
      %p133 = scmp.eq.s32.totalorder %s23, 23
      %p134 = por %p132, %p133
      %p135 = scmp.ne.s32.totalorder %s124, %s125
      %p136 = scmp.eq.s32.totalorder %s23, 0
      %p137 = por %p135, %p136
      %p138 = scmp.ne.s32.totalorder %s124, %s125
      %p139 = scmp.eq.s32.totalorder %s24, 23
      %p140 = por %p138, %p139
      %p142 = scmp.ne.s32.totalorder %s125, %s141
      %p143 = scmp.eq.s32.totalorder %s24, 0
      %p144 = por %p142, %p143
      %s145 = ssub.s32 %s25, %s44
      %s146 = ssub.s32 %s26, %s40
      %s147 = sor.u32 %s145, %s146
      %p148 = scmp.eq.s32.totalorder %s147, 0
      %s150 = sadd.s32 %s149, 1
      %s151 = scalar_select %p148, %s149, %s150
      %p154 = pneg %p148
      %p155 = scmp.eq.s32.totalorder %s18, 23
      %p156 = por %p154, %p155
      %p157 = scmp.ne.s32.totalorder %s149, %s152
      %p158 = scmp.eq.s32.totalorder %s18, 0
      %p159 = por %p157, %p158
      %p160 = scmp.ne.s32.totalorder %s149, %s152
      %p161 = scmp.eq.s32.totalorder %s23, 23
      %p162 = por %p160, %p161
      %p163 = scmp.ne.s32.totalorder %s152, %s153
      %p164 = scmp.eq.s32.totalorder %s23, 0
      %p165 = por %p163, %p164
      %p166 = scmp.ne.s32.totalorder %s152, %s153
      %p167 = scmp.eq.s32.totalorder %s24, 23
      %p168 = por %p166, %p167
      %p170 = scmp.ne.s32.totalorder %s153, %s169
      %p171 = scmp.eq.s32.totalorder %s24, 0
      %p172 = por %p170, %p171
      %s173 = ssub.s32 %s25, %s44
      %s174 = ssub.s32 %s26, %s40
      %s175 = sor.u32 %s173, %s174
      %p176 = scmp.eq.s32.totalorder %s175, 0
      %s178 = sadd.s32 %s177, 1
      %s179 = scalar_select %p176, %s177, %s178
      %p182 = pneg %p176
      %p183 = scmp.eq.s32.totalorder %s18, 23
      %p184 = por %p182, %p183
      %p185 = scmp.ne.s32.totalorder %s177, %s180
      %p186 = scmp.eq.s32.totalorder %s18, 0
      %p187 = por %p185, %p186
      %p188 = scmp.ne.s32.totalorder %s177, %s180
      %p189 = scmp.eq.s32.totalorder %s23, 23
      %p190 = por %p188, %p189
      %p191 = scmp.ne.s32.totalorder %s180, %s181
      %p192 = scmp.eq.s32.totalorder %s23, 0
      %p193 = por %p191, %p192
      %p194 = scmp.ne.s32.totalorder %s180, %s181
      %p195 = scmp.eq.s32.totalorder %s24, 23
      %p196 = por %p194, %p195
      %p198 = scmp.ne.s32.totalorder %s181, %s197
      %p199 = scmp.eq.s32.totalorder %s24, 0
      %p200 = por %p198, %p199
      %p201 = scmp.le.s32.totalorder 1, %s18
      %p202 = scmp.lt.s32.totalorder %s18, 25
      %p203 = pnand %p201, %p202
      %p204 = pneg %p203
      // Predicated region
      $region9: #{tpu_custom_call.1} parent=5 // pred_check
        _
      $region10: #{tpu_custom_call.1} parent=5 // pred_check_branch
        %206 = sbr.rel (%p203) target = $region12
      $region11: #{tpu_custom_call.1} parent=5 // pred_region
        %s207 = ssub.s32 %s18, 1
        // Predicated region
        $region13: #{tpu_custom_call.1} parent=11 // pred_check
          %p208 = pneg %p88
        $region14: #{tpu_custom_call.1} parent=11 // pred_check_branch
          %210 = sbr.rel (%p208) target = $region16
        $region15: #{tpu_custom_call.1} parent=11 // pred_region
          _
        $region16: #{tpu_custom_call.1} parent=11 // pred_fallthru
          _
        // Predicated region
        $region17: #{tpu_custom_call.1} parent=11 // pred_check
          %p211 = pneg %p109
        $region18: #{tpu_custom_call.1} parent=11 // pred_check_branch
          %213 = sbr.rel (%p211) target = $region20
        $region19: #{tpu_custom_call.1} parent=11 // pred_region
          _
        $region20: #{tpu_custom_call.1} parent=11 // pred_fallthru
          _
      $region12: #{tpu_custom_call.1} parent=5 // pred_fallthru
        _
      %p214 = scmp.lt.s32.totalorder %s18, 24
      // Predicated region
      $region21: #{tpu_custom_call.1} parent=5 // pred_check
        %p215 = pneg %p214
      $region22: #{tpu_custom_call.1} parent=5 // pred_check_branch
        %217 = sbr.rel (%p215) target = $region24
      $region23: #{tpu_custom_call.1} parent=5 // pred_region
        // Predicated region
        $region25: #{tpu_custom_call.1} parent=23 // pred_check
          %p218 = pneg %p61
        $region26: #{tpu_custom_call.1} parent=23 // pred_check_branch
          %220 = sbr.rel (%p218) target = $region28
        $region27: #{tpu_custom_call.1} parent=23 // pred_region
          %s221 = sadd.s32 %s26, %s27
          %p222 = scmp.lt.s32.totalorder %s25, 1
          %s223 = scalar_select %p222, %s25, 1
          %p224 = scmp.lt.s32.totalorder %s221, 5
          %s225 = scalar_select %p224, %s221, 5
          %s226 = smul.addr %s225, 13
          %s227 = smul.addr %s223, 78
          %s228 = sadd.s32 %s226, %s227
          %s229 = smul.addr %s228, 4
          %s230 = scalar_lea.vmem %s0, %s229
          %s231 = sadd.s32 %s26, %s27
        $region28: #{tpu_custom_call.1} parent=23 // pred_fallthru
          _
      $region24: #{tpu_custom_call.1} parent=5 // pred_fallthru
        _
      %p232 = scmp.le.s32.totalorder 1, %s18
      %p233 = scmp.lt.s32.totalorder %s18, 25
      %p234 = pnand %p232, %p233
      %p235 = pneg %p234
      // Predicated region
      $region29: #{tpu_custom_call.1} parent=5 // pred_check
        _
      $region30: #{tpu_custom_call.1} parent=5 // pred_check_branch
        %237 = sbr.rel (%p234) target = $region32
      $region31: #{tpu_custom_call.1} parent=5 // pred_region
        %s238 = ssub.s32 %s18, 1
        %s239 = sadd.s32 %s29, %s30
        %p240 = scmp.lt.s32.totalorder %s28, 1
        %s241 = scalar_select %p240, %s28, 1
        %p242 = scmp.lt.s32.totalorder %s239, 5
        %s243 = scalar_select %p242, %s239, 5
        %s244 = smul.addr %s243, 13
        %s245 = smul.addr %s241, 78
        %s246 = sadd.s32 %s244, %s245
        %s247 = smul.addr %s246, 4
        %s248 = scalar_lea.vmem %s0, %s247
        %p249 = pneg %p67
        %p250 = pneg %p64
        %p251 = pneg %p88
        %p252 = pneg %p85
        %p253 = pneg %p109
        %p254 = pneg %p106
        %p255 = pneg %p137
        %p256 = pneg %p134
        %s257 = sand.u32 %s124, 1
        %s258 = scalar_lea.sflag [#allocation4], %s257
        %s259 = sand.u32 %s124, 1
        %s260 = smul.addr %s259, 40
        %s261 = scalar_lea.vmem [#allocation3], %s260
        %p262 = pneg %p165
        %p263 = pneg %p162
        %s264 = sand.u32 %s23, 1
        %s265 = scalar_lea.sflag [#allocation6], %s264
        %s266 = sand.u32 %s152, 1
        %s267 = scalar_lea.vmem [#allocation5], %s266
        %p268 = pneg %p193
        %p269 = pneg %p190
        %s270 = sand.u32 %s23, 1
        %s271 = scalar_lea.sflag [#allocation6], %s270
        %s272 = sand.u32 %s180, 1
        %s273 = scalar_lea.vmem [#allocation7], %s272
        %s274 = sadd.s32 %s29, %s30
        %p275 = scmp.lt.s32.totalorder %s28, 1
        %s276 = scalar_select %p275, %s28, 1
        %p277 = scmp.lt.s32.totalorder %s274, 5
        %s278 = scalar_select %p277, %s274, 5
        %s279 = smul.addr %s278, 13
        %s280 = smul.addr %s276, 78
        %s281 = sadd.s32 %s279, %s280
        %s282 = smul.addr %s281, 4
        %s283 = scalar_lea.vmem %s0, %s282
        %s284 = sadd.s32 %s29, %s30
        %p286 = scmp.eq.s32.totalorder %s30, 0
        // Predicated region
        $region33: #{tpu_custom_call.1} parent=31 // pred_check
          %p287 = pneg %p286
        $region34: #{tpu_custom_call.1} parent=31 // pred_check_branch
          %289 = sbr.rel (%p287) target = $region36
        $region35: #{tpu_custom_call.1} parent=31 // pred_region
          %290 = vst [vmem:[#allocation2] sm:$0xff] 0.0
          %291 = vst [vmem:[#allocation2 + $0x8] sm:$0xff] 0.0
          %292 = vst [vmem:[#allocation2 + $0x10] sm:$0xff] 0.0
          %293 = vst [vmem:[#allocation2 + $0x18] sm:$0xff] 0.0
          %294 = vst [vmem:[#allocation2 + $0x20] sm:$0xff] 0.0
          %295 = vst [vmem:[#allocation2 + $0x28] sm:$0xff] 0.0
          %296 = vst [vmem:[#allocation2 + $0x30] sm:$0xff] 0.0
          %297 = vst [vmem:[#allocation2 + $0x38] sm:$0xff] 0.0
          %298 = vst [vmem:[#allocation2 + $0x40] sm:$0xff] 0.0
          %299 = vst [vmem:[#allocation2 + $0x48] sm:$0xff] 0.0
        $region36: #{tpu_custom_call.1} parent=31 // pred_fallthru
          _
        %v300 = vld [vmem:[%s283] sm:$0xf]
        %v301 = vld [vmem:[%s283 + $0x4] sm:$0xf]
        %v302 = vld [vmem:[%s283 + $0x8] sm:$0xf]
        %v303 = vld [vmem:[%s283 + $0xc] sm:$0xf]
        %v304 = vld [vmem:[%s283 + $0x10] sm:$0xf]
        %v305 = vld [vmem:[%s283 + $0x14] sm:$0xf]
        %v306 = vld [vmem:[%s283 + $0x18] sm:$0xf]
        %v307 = vld [vmem:[%s283 + $0x1c] sm:$0xf]
        %v308 = vld [vmem:[%s283 + $0x20] sm:$0xf]
        %v309 = vld [vmem:[%s283 + $0x24] sm:$0xf]
        %s310 = smul.u32 %s30, 9
        %s311 = smul.addr %s310, 2
        %s312 = scalar_lea.vmem %s1, %s311
        %v313 = vld [vmem:[%s312] sm:$0x3]
        %v314 = vld [vmem:[%s283 + $0x28] sm:$0x1]
        %s315 = sadd.s32 %s310, 1
        %s316 = smul.addr %s315, 2
        %s317 = scalar_lea.vmem %s1, %s316
        %v318 = vld [vmem:[%s317] sm:$0x3]
        %v330 = vunpack.c.l.b16 %v300
        %v331 = vunpack.c.l.b16 %v301
        %v332 = vunpack.c.l.b16 %v302
        %v333 = vunpack.c.l.b16 %v303
        %v334 = vunpack.c.l.b16 %v304
        %v335 = vunpack.c.l.b16 %v305
        %v336 = vunpack.c.l.b16 %v306
        %v337 = vunpack.c.l.b16 %v307
        %v338 = vunpack.c.l.b16 %v308
        %v339 = vunpack.c.l.b16 %v309
        %v340 = vunpack.c.l.b16 %v314
        %v341 = vpack.c.b16 %v331, %v330
        %v342 = vpack.c.b16 %v333, %v332
        %v343 = vpack.c.b16 %v335, %v334
        %v344 = vpack.c.b16 %v337, %v336
        %v345 = vpack.c.b16 %v339, %v338
        %v346 = vpack.c.b16 %v340, %v340
        %vm347 = vsmask.f32 7424
        %v349 = vshrl.u32 %v341, 16
        %v351 = vshll.u32 %v341, 16
        %v353 = vrot.slane %v351, 1
        %v354 = vor.u32 %v349, %v353
        %v356 = vshll.u32 %v342, 16
        %v358 = vrot.slane %v356, 1
        %v359 = vsel %vm347, %v354, %v358
        %v360 = vshrl.u32 %v342, 16
        %v362 = vor.u32 %v360, %v358
        %v364 = vshll.u32 %v343, 16
        %v366 = vrot.slane %v364, 1
        %v367 = vsel %vm347, %v362, %v366
        %v368 = vshrl.u32 %v343, 16
        %v370 = vor.u32 %v368, %v366
        %v372 = vshll.u32 %v344, 16
        %v374 = vrot.slane %v372, 1
        %v375 = vsel %vm347, %v370, %v374
        %v376 = vshrl.u32 %v344, 16
        %v378 = vor.u32 %v376, %v374
        %v380 = vshll.u32 %v345, 16
        %v382 = vrot.slane %v380, 1
        %v383 = vsel %vm347, %v378, %v382
        %v384 = vshrl.u32 %v345, 16
        %v386 = vor.u32 %v384, %v382
        %v388 = vshll.u32 %v346, 16
        %v390 = vrot.slane %v388, 1
        %v391 = vsel %vm347, %v386, %v390
        %vm392 = vcmask 31744
        %v394 = vsel %vm392, %v359, 0
        %v397 = vsel %vm392, %v367, 0
        %v400 = vsel %vm392, %v375, 0
        %v403 = vsel %vm392, %v383, 0
        %v406 = vsel %vm392, %v391, 0
        %vm408 = vcmask 1041408
        %v410 = vsel %vm408, %v318, 0
        %412 = vmatprep.subr.bf16.mxu0 0
        %413 = vmatpush1.bf16.msra.mxu0 %v410
        %414 = vmatprep.subr.bf16.mxu0 0
        %415 = vmatpush1.bf16.msra.mxu0 0
        %416 = vmatprep.subr.bf16.mxu0 0
        %417 = vmatpush1.bf16.msra.mxu0 0
        %418 = vmatprep.subr.bf16.mxu0 0
        %419 = vmatpush1.bf16.msra.mxu0 0
        %420 = vmatprep.subr.bf16.mxu0 0
        %421 = vmatpush1.bf16.msra.mxu0 0
        %422 = vmatprep.subr.bf16.mxu0 0
        %423 = vmatpush1.bf16.msra.mxu0 0
        %424 = vmatprep.subr.bf16.mxu0 0
        %425 = vmatpush1.bf16.msra.mxu0 0
        %426 = vmatprep.subr.bf16.mxu0 0
        %427 = vmatpush1.bf16.msra.mxu0 0
        %428 = vmatprep.subr.bf16.mxu0 0
        %429 = vmatpush1.bf16.msra.mxu0 0
        %430 = vmatprep.subr.bf16.mxu0 0
        %431 = vmatpush1.bf16.msra.mxu0 0
        %432 = vmatprep.subr.bf16.mxu0 0
        %433 = vmatpush1.bf16.msra.mxu0 0
        %434 = vmatprep.subr.bf16.mxu0 0
        %435 = vmatpush1.bf16.msra.mxu0 0
        %436 = vmatprep.subr.bf16.mxu0 0
        %437 = vmatpush1.bf16.msra.mxu0 0
        %438 = vmatprep.subr.bf16.mxu0 0
        %439 = vmatpush1.bf16.msra.mxu0 0
        %440 = vmatprep.subr.bf16.mxu0 0
        %441 = vmatpush1.bf16.msra.mxu0 0
        %442 = vmatprep.subr.bf16.mxu0 0
        %443 = vmatpush1.bf16.msra.mxu0 0
        %444 = vmatprep.mubr.bf16.mxu0 0
        %445 = vmatmul.mubr.bf16.gmra.mrb[0].mxu0 %v394
        %v446 = vpop.f32.mrb[0].mxu0
        %v447 = vadd.f32 0.0, %v446
        %v448 = vpop.f32.mrb[0].mxu0
        %v449 = vpop.f32.mrb[0].mxu0
        %v450 = vadd.f32 0.0, %v449
        %v451 = vpop.f32.mrb[0].mxu0
        %452 = vmatprep.mubr.bf16.mxu0 0
        %453 = vmatmul.mubr.bf16.gmra.mrb[0].mxu0 %v397
        %v454 = vpop.f32.mrb[0].mxu0
        %v455 = vadd.f32 0.0, %v454
        %v456 = vpop.f32.mrb[0].mxu0
        %v457 = vpop.f32.mrb[0].mxu0
        %v458 = vadd.f32 0.0, %v457
        %v459 = vpop.f32.mrb[0].mxu0
        %460 = vmatprep.mubr.bf16.mxu0 0
        %461 = vmatmul.mubr.bf16.gmra.mrb[0].mxu0 %v400
        %v462 = vpop.f32.mrb[0].mxu0
        %v463 = vadd.f32 0.0, %v462
        %v464 = vpop.f32.mrb[0].mxu0
        %v465 = vpop.f32.mrb[0].mxu0
        %v466 = vadd.f32 0.0, %v465
        %v467 = vpop.f32.mrb[0].mxu0
        %468 = vmatprep.mubr.bf16.mxu0 0
        %469 = vmatmul.mubr.bf16.gmra.mrb[0].mxu0 %v403
        %v470 = vpop.f32.mrb[0].mxu0
        %v471 = vadd.f32 0.0, %v470
        %v472 = vpop.f32.mrb[0].mxu0
        %v473 = vpop.f32.mrb[0].mxu0
        %v474 = vadd.f32 0.0, %v473
        %v475 = vpop.f32.mrb[0].mxu0
        %476 = vmatprep.mubr.bf16.mxu0 0
        %477 = vmatmul.mubr.bf16.gmra.mrb[0].mxu0 %v406
        %v478 = vpop.f32.mrb[0].mxu0
        %v479 = vadd.f32 0.0, %v478
        %v480 = vpop.f32.mrb[0].mxu0
        %v481 = vpop.f32.mrb[0].mxu0
        %v482 = vadd.f32 0.0, %v481
        %v483 = vpop.f32.mrb[0].mxu0
        %484 = vdwg.mxu0
        %v485 = vsel %vm392, %v341, 0
        %v487 = vsel %vm392, %v342, 0
        %v489 = vsel %vm392, %v343, 0
        %v491 = vsel %vm392, %v344, 0
        %v493 = vsel %vm392, %v345, 0
        %v496 = vsel %vm408, %v313, 0
        %498 = vmatprep.subr.bf16.mxu0 0
        %499 = vmatpush1.bf16.msra.mxu0 %v496
        %500 = vmatprep.subr.bf16.mxu0 0
        %501 = vmatpush1.bf16.msra.mxu0 0
        %502 = vmatprep.subr.bf16.mxu0 0
        %503 = vmatpush1.bf16.msra.mxu0 0
        %504 = vmatprep.subr.bf16.mxu0 0
        %505 = vmatpush1.bf16.msra.mxu0 0
        %506 = vmatprep.subr.bf16.mxu0 0
        %507 = vmatpush1.bf16.msra.mxu0 0
        %508 = vmatprep.subr.bf16.mxu0 0
        %509 = vmatpush1.bf16.msra.mxu0 0
        %510 = vmatprep.subr.bf16.mxu0 0
        %511 = vmatpush1.bf16.msra.mxu0 0
        %512 = vmatprep.subr.bf16.mxu0 0
        %513 = vmatpush1.bf16.msra.mxu0 0
        %514 = vmatprep.subr.bf16.mxu0 0
        %515 = vmatpush1.bf16.msra.mxu0 0
        %516 = vmatprep.subr.bf16.mxu0 0
        %517 = vmatpush1.bf16.msra.mxu0 0
        %518 = vmatprep.subr.bf16.mxu0 0
        %519 = vmatpush1.bf16.msra.mxu0 0
        %520 = vmatprep.subr.bf16.mxu0 0
        %521 = vmatpush1.bf16.msra.mxu0 0
        %522 = vmatprep.subr.bf16.mxu0 0
        %523 = vmatpush1.bf16.msra.mxu0 0
        %524 = vmatprep.subr.bf16.mxu0 0
        %525 = vmatpush1.bf16.msra.mxu0 0
        %526 = vmatprep.subr.bf16.mxu0 0
        %527 = vmatpush1.bf16.msra.mxu0 0
        %528 = vmatprep.subr.bf16.mxu0 0
        %529 = vmatpush1.bf16.msra.mxu0 0
        %530 = vmatprep.mubr.bf16.mxu0 0
        %531 = vmatmul.mubr.bf16.gmra.mrb[0].mxu0 %v485
        %v532 = vpop.f32.mrb[0].mxu0
        %v533 = vadd.f32 %v447, %v532
        %v534 = vpop.f32.mrb[0].mxu0
        %v535 = vpop.f32.mrb[0].mxu0
        %v536 = vadd.f32 %v450, %v535
        %v537 = vpop.f32.mrb[0].mxu0
        %538 = vmatprep.mubr.bf16.mxu0 0
        %539 = vmatmul.mubr.bf16.gmra.mrb[0].mxu0 %v487
        %v540 = vpop.f32.mrb[0].mxu0
        %v541 = vadd.f32 %v455, %v540
        %v542 = vpop.f32.mrb[0].mxu0
        %v543 = vpop.f32.mrb[0].mxu0
        %v544 = vadd.f32 %v458, %v543
        %v545 = vpop.f32.mrb[0].mxu0
        %546 = vmatprep.mubr.bf16.mxu0 0
        %547 = vmatmul.mubr.bf16.gmra.mrb[0].mxu0 %v489
        %v548 = vpop.f32.mrb[0].mxu0
        %v549 = vadd.f32 %v463, %v548
        %v550 = vpop.f32.mrb[0].mxu0
        %v551 = vpop.f32.mrb[0].mxu0
        %v552 = vadd.f32 %v466, %v551
        %v553 = vpop.f32.mrb[0].mxu0
        %554 = vmatprep.mubr.bf16.mxu0 0
        %555 = vmatmul.mubr.bf16.gmra.mrb[0].mxu0 %v491
        %v556 = vpop.f32.mrb[0].mxu0
        %v557 = vadd.f32 %v471, %v556
        %v558 = vpop.f32.mrb[0].mxu0
        %v559 = vpop.f32.mrb[0].mxu0
        %v560 = vadd.f32 %v474, %v559
        %v561 = vpop.f32.mrb[0].mxu0
        %562 = vmatprep.mubr.bf16.mxu0 0
        %563 = vmatmul.mubr.bf16.gmra.mrb[0].mxu0 %v493
        %v564 = vpop.f32.mrb[0].mxu0
        %v565 = vadd.f32 %v479, %v564
        %v566 = vpop.f32.mrb[0].mxu0
        %v567 = vpop.f32.mrb[0].mxu0
        %v568 = vadd.f32 %v482, %v567
        %v569 = vpop.f32.mrb[0].mxu0
        %570 = vdwg.mxu0
        %v571 = vld [vmem:[%s283] sm:$0xe]
        %s572 = sadd.s32 %s310, 2
        %s573 = smul.addr %s572, 2
        %s574 = scalar_lea.vmem %s1, %s573
        %v575 = vld [vmem:[%s574] sm:$0x3]
        %v577 = vunpack.c.l.b16 %v571
        %v578 = vpack.c.b16 %v331, %v577
        %vm579 = vcmask 1046528
        %v580 = vrot.slane %v578, 1
        %v581 = vrot.slane %v342, 1
        %v582 = vsel %vm579, %v580, %v581
        %v583 = vrot.slane %v343, 1
        %v584 = vsel %vm579, %v581, %v583
        %v585 = vrot.slane %v344, 1
        %v586 = vsel %vm579, %v583, %v585
        %v587 = vrot.slane %v345, 1
        %v588 = vsel %vm579, %v585, %v587
        %v589 = vrot.slane %v346, 1
        %v590 = vsel %vm579, %v587, %v589
        %v592 = vsel %vm392, %v582, 0
        %v595 = vsel %vm392, %v584, 0
        %v598 = vsel %vm392, %v586, 0
        %v601 = vsel %vm392, %v588, 0
        %v604 = vsel %vm392, %v590, 0
        %v607 = vsel %vm408, %v575, 0
        %609 = vmatprep.subr.bf16.mxu0 0
        %610 = vmatpush1.bf16.msra.mxu0 %v607
        %611 = vmatprep.subr.bf16.mxu0 0
        %612 = vmatpush1.bf16.msra.mxu0 0
        %613 = vmatprep.subr.bf16.mxu0 0
        %614 = vmatpush1.bf16.msra.mxu0 0
        %615 = vmatprep.subr.bf16.mxu0 0
        %616 = vmatpush1.bf16.msra.mxu0 0
        %617 = vmatprep.subr.bf16.mxu0 0
        %618 = vmatpush1.bf16.msra.mxu0 0
        %619 = vmatprep.subr.bf16.mxu0 0
        %620 = vmatpush1.bf16.msra.mxu0 0
        %621 = vmatprep.subr.bf16.mxu0 0
        %622 = vmatpush1.bf16.msra.mxu0 0
        %623 = vmatprep.subr.bf16.mxu0 0
        %624 = vmatpush1.bf16.msra.mxu0 0
        %625 = vmatprep.subr.bf16.mxu0 0
        %626 = vmatpush1.bf16.msra.mxu0 0
        %627 = vmatprep.subr.bf16.mxu0 0
        %628 = vmatpush1.bf16.msra.mxu0 0
        %629 = vmatprep.subr.bf16.mxu0 0
        %630 = vmatpush1.bf16.msra.mxu0 0
        %631 = vmatprep.subr.bf16.mxu0 0
        %632 = vmatpush1.bf16.msra.mxu0 0
        %633 = vmatprep.subr.bf16.mxu0 0
        %634 = vmatpush1.bf16.msra.mxu0 0
        %635 = vmatprep.subr.bf16.mxu0 0
        %636 = vmatpush1.bf16.msra.mxu0 0
        %637 = vmatprep.subr.bf16.mxu0 0
        %638 = vmatpush1.bf16.msra.mxu0 0
        %639 = vmatprep.subr.bf16.mxu0 0
        %640 = vmatpush1.bf16.msra.mxu0 0
        %641 = vmatprep.mubr.bf16.mxu0 0
        %642 = vmatmul.mubr.bf16.gmra.mrb[0].mxu0 %v592
        %v643 = vpop.f32.mrb[0].mxu0
        %v644 = vadd.f32 0.0, %v643
        %v645 = vpop.f32.mrb[0].mxu0
        %v646 = vpop.f32.mrb[0].mxu0
        %v647 = vadd.f32 0.0, %v646
        %v648 = vpop.f32.mrb[0].mxu0
        %649 = vmatprep.mubr.bf16.mxu0 0
        %650 = vmatmul.mubr.bf16.gmra.mrb[0].mxu0 %v595
        %v651 = vpop.f32.mrb[0].mxu0
        %v652 = vadd.f32 0.0, %v651
        %v653 = vpop.f32.mrb[0].mxu0
        %v654 = vpop.f32.mrb[0].mxu0
        %v655 = vadd.f32 0.0, %v654
        %v656 = vpop.f32.mrb[0].mxu0
        %657 = vmatprep.mubr.bf16.mxu0 0
        %658 = vmatmul.mubr.bf16.gmra.mrb[0].mxu0 %v598
        %v659 = vpop.f32.mrb[0].mxu0
        %v660 = vadd.f32 0.0, %v659
        %v661 = vpop.f32.mrb[0].mxu0
        %v662 = vpop.f32.mrb[0].mxu0
        %v663 = vadd.f32 0.0, %v662
        %v664 = vpop.f32.mrb[0].mxu0
        %665 = vmatprep.mubr.bf16.mxu0 0
        %666 = vmatmul.mubr.bf16.gmra.mrb[0].mxu0 %v601
        %v667 = vpop.f32.mrb[0].mxu0
        %v668 = vadd.f32 0.0, %v667
        %v669 = vpop.f32.mrb[0].mxu0
        %v670 = vpop.f32.mrb[0].mxu0
        %v671 = vadd.f32 0.0, %v670
        %v672 = vpop.f32.mrb[0].mxu0
        %673 = vmatprep.mubr.bf16.mxu0 0
        %674 = vmatmul.mubr.bf16.gmra.mrb[0].mxu0 %v604
        %v675 = vpop.f32.mrb[0].mxu0
        %v676 = vadd.f32 0.0, %v675
        %v677 = vpop.f32.mrb[0].mxu0
        %v678 = vpop.f32.mrb[0].mxu0
        %v679 = vadd.f32 0.0, %v678
        %v680 = vpop.f32.mrb[0].mxu0
        %681 = vdwg.mxu0
        %v682 = vadd.f32 %v533, %v644
        %v683 = vadd.f32 %v536, %v647
        %v684 = vadd.f32 %v541, %v652
        %v685 = vadd.f32 %v544, %v655
        %v686 = vadd.f32 %v549, %v660
        %v687 = vadd.f32 %v552, %v663
        %v688 = vadd.f32 %v557, %v668
        %v689 = vadd.f32 %v560, %v671
        %v690 = vadd.f32 %v565, %v676
        %v691 = vadd.f32 %v568, %v679
        %v692 = vld [vmem:[%s283 + $0x4] sm:$0xe]
        %v693 = vld [vmem:[%s283 + $0x8] sm:$0xf]
        %v694 = vld [vmem:[%s283 + $0xc] sm:$0xf]
        %v695 = vld [vmem:[%s283 + $0x10] sm:$0xf]
        %v696 = vld [vmem:[%s283 + $0x14] sm:$0xf]
        %v697 = vld [vmem:[%s283 + $0x18] sm:$0xf]
        %v698 = vld [vmem:[%s283 + $0x1c] sm:$0xf]
        %v699 = vld [vmem:[%s283 + $0x20] sm:$0xf]
        %v700 = vld [vmem:[%s283 + $0x24] sm:$0xf]
        %v701 = vld [vmem:[%s283 + $0x28] sm:$0xf]
        %v702 = vld [vmem:[%s283 + $0x2c] sm:$0x1]
        %s703 = sadd.s32 %s310, 3
        %s704 = smul.addr %s703, 2
        %s705 = scalar_lea.vmem %s1, %s704
        %v706 = vld [vmem:[%s705] sm:$0x3]
        %v718 = vunpack.c.l.b16 %v692
        %v719 = vunpack.c.l.b16 %v693
        %v720 = vunpack.c.l.b16 %v694
        %v721 = vunpack.c.l.b16 %v695
        %v722 = vunpack.c.l.b16 %v696
        %v723 = vunpack.c.l.b16 %v697
        %v724 = vunpack.c.l.b16 %v698
        %v725 = vunpack.c.l.b16 %v699
        %v726 = vunpack.c.l.b16 %v700
        %v727 = vunpack.c.l.b16 %v701
        %v728 = vunpack.c.l.b16 %v702
        %v729 = vpack.c.b16 %v719, %v718
        %v730 = vpack.c.b16 %v721, %v720
        %v731 = vpack.c.b16 %v723, %v722
        %v732 = vpack.c.b16 %v725, %v724
        %v733 = vpack.c.b16 %v727, %v726
        %v734 = vpack.c.b16 %v728, %v728
        %v735 = vrot.slane %v729, 1
        %v736 = vrot.slane %v730, 1
        %v737 = vsel %vm579, %v735, %v736
        %v738 = vrot.slane %v731, 1
        %v739 = vsel %vm579, %v736, %v738
        %v740 = vrot.slane %v732, 1
        %v741 = vsel %vm579, %v738, %v740
        %v742 = vrot.slane %v733, 1
        %v743 = vsel %vm579, %v740, %v742
        %v744 = vrot.slane %v734, 1
        %v745 = vsel %vm579, %v742, %v744
        %v747 = vsel %vm392, %v737, 0
        %v750 = vsel %vm392, %v739, 0
        %v753 = vsel %vm392, %v741, 0
        %v756 = vsel %vm392, %v743, 0
        %v759 = vsel %vm392, %v745, 0
        %v762 = vsel %vm408, %v706, 0
        %764 = vmatprep.subr.bf16.mxu0 0
        %765 = vmatpush1.bf16.msra.mxu0 %v762
        %766 = vmatprep.subr.bf16.mxu0 0
        %767 = vmatpush1.bf16.msra.mxu0 0
        %768 = vmatprep.subr.bf16.mxu0 0
        %769 = vmatpush1.bf16.msra.mxu0 0
        %770 = vmatprep.subr.bf16.mxu0 0
        %771 = vmatpush1.bf16.msra.mxu0 0
        %772 = vmatprep.subr.bf16.mxu0 0
        %773 = vmatpush1.bf16.msra.mxu0 0
        %774 = vmatprep.subr.bf16.mxu0 0
        %775 = vmatpush1.bf16.msra.mxu0 0
        %776 = vmatprep.subr.bf16.mxu0 0
        %777 = vmatpush1.bf16.msra.mxu0 0
        %778 = vmatprep.subr.bf16.mxu0 0
        %779 = vmatpush1.bf16.msra.mxu0 0
        %780 = vmatprep.subr.bf16.mxu0 0
        %781 = vmatpush1.bf16.msra.mxu0 0
        %782 = vmatprep.subr.bf16.mxu0 0
        %783 = vmatpush1.bf16.msra.mxu0 0
        %784 = vmatprep.subr.bf16.mxu0 0
        %785 = vmatpush1.bf16.msra.mxu0 0
        %786 = vmatprep.subr.bf16.mxu0 0
        %787 = vmatpush1.bf16.msra.mxu0 0
        %788 = vmatprep.subr.bf16.mxu0 0
        %789 = vmatpush1.bf16.msra.mxu0 0
        %790 = vmatprep.subr.bf16.mxu0 0
        %791 = vmatpush1.bf16.msra.mxu0 0
        %792 = vmatprep.subr.bf16.mxu0 0
        %793 = vmatpush1.bf16.msra.mxu0 0
        %794 = vmatprep.subr.bf16.mxu0 0
        %795 = vmatpush1.bf16.msra.mxu0 0
        %796 = vmatprep.mubr.bf16.mxu0 0
        %797 = vmatmul.mubr.bf16.gmra.mrb[0].mxu0 %v747
        %v798 = vpop.f32.mrb[0].mxu0
        %v799 = vadd.f32 0.0, %v798
        %v800 = vpop.f32.mrb[0].mxu0
        %v801 = vpop.f32.mrb[0].mxu0
        %v802 = vadd.f32 0.0, %v801
        %v803 = vpop.f32.mrb[0].mxu0
        %804 = vmatprep.mubr.bf16.mxu0 0
        %805 = vmatmul.mubr.bf16.gmra.mrb[0].mxu0 %v750
        %v806 = vpop.f32.mrb[0].mxu0
        %v807 = vadd.f32 0.0, %v806
        %v808 = vpop.f32.mrb[0].mxu0
        %v809 = vpop.f32.mrb[0].mxu0
        %v810 = vadd.f32 0.0, %v809
        %v811 = vpop.f32.mrb[0].mxu0
        %812 = vmatprep.mubr.bf16.mxu0 0
        %813 = vmatmul.mubr.bf16.gmra.mrb[0].mxu0 %v753
        %v814 = vpop.f32.mrb[0].mxu0
        %v815 = vadd.f32 0.0, %v814
        %v816 = vpop.f32.mrb[0].mxu0
        %v817 = vpop.f32.mrb[0].mxu0
        %v818 = vadd.f32 0.0, %v817
        %v819 = vpop.f32.mrb[0].mxu0
        %820 = vmatprep.mubr.bf16.mxu0 0
        %821 = vmatmul.mubr.bf16.gmra.mrb[0].mxu0 %v756
        %v822 = vpop.f32.mrb[0].mxu0
        %v823 = vadd.f32 0.0, %v822
        %v824 = vpop.f32.mrb[0].mxu0
        %v825 = vpop.f32.mrb[0].mxu0
        %v826 = vadd.f32 0.0, %v825
        %v827 = vpop.f32.mrb[0].mxu0
        %828 = vmatprep.mubr.bf16.mxu0 0
        %829 = vmatmul.mubr.bf16.gmra.mrb[0].mxu0 %v759
        %v830 = vpop.f32.mrb[0].mxu0
        %v831 = vadd.f32 0.0, %v830
        %v832 = vpop.f32.mrb[0].mxu0
        %v833 = vpop.f32.mrb[0].mxu0
        %v834 = vadd.f32 0.0, %v833
        %v835 = vpop.f32.mrb[0].mxu0
        %836 = vdwg.mxu0
        %v837 = vadd.f32 %v682, %v799
        %v838 = vadd.f32 %v683, %v802
        %v839 = vadd.f32 %v684, %v807
        %v840 = vadd.f32 %v685, %v810
        %v841 = vadd.f32 %v686, %v815
        %v842 = vadd.f32 %v687, %v818
        %v843 = vadd.f32 %v688, %v823
        %v844 = vadd.f32 %v689, %v826
        %v845 = vadd.f32 %v690, %v831
        %v846 = vadd.f32 %v691, %v834
        %v847 = vld [vmem:[%s283 + $0x2c] sm:$0x3]
        %s848 = sadd.s32 %s310, 4
        %s849 = smul.addr %s848, 2
        %s850 = scalar_lea.vmem %s1, %s849
        %v851 = vld [vmem:[%s850] sm:$0x3]
        %v853 = vunpack.c.l.b16 %v847
        %v854 = vpack.c.b16 %v853, %v853
        %vm855 = vsmask.f32 6400
        %v857 = vshrl.u32 %v729, 16
        %v859 = vrot.slane %v857, 1
        %v860 = vshll.u32 %v729, 16
        %v862 = vrot.slane %v860, 2
        %v863 = vor.u32 %v859, %v862
        %v865 = vshrl.u32 %v730, 16
        %v867 = vrot.slane %v865, 1
        %v868 = vshll.u32 %v730, 16
        %v870 = vrot.slane %v868, 2
        %v871 = vor.u32 %v867, %v870
        %v872 = vsel %vm855, %v863, %v871
        %v874 = vshrl.u32 %v731, 16
        %v876 = vrot.slane %v874, 1
        %v877 = vshll.u32 %v731, 16
        %v879 = vrot.slane %v877, 2
        %v880 = vor.u32 %v876, %v879
        %v881 = vsel %vm855, %v871, %v880
        %v883 = vshrl.u32 %v732, 16
        %v885 = vrot.slane %v883, 1
        %v886 = vshll.u32 %v732, 16
        %v888 = vrot.slane %v886, 2
        %v889 = vor.u32 %v885, %v888
        %v890 = vsel %vm855, %v880, %v889
        %v892 = vshrl.u32 %v733, 16
        %v894 = vrot.slane %v892, 1
        %v895 = vshll.u32 %v733, 16
        %v897 = vrot.slane %v895, 2
        %v898 = vor.u32 %v894, %v897
        %v899 = vsel %vm855, %v889, %v898
        %v901 = vshrl.u32 %v854, 16
        %v903 = vrot.slane %v901, 1
        %v904 = vshll.u32 %v854, 16
        %v906 = vrot.slane %v904, 2
        %v907 = vor.u32 %v903, %v906
        %v908 = vsel %vm855, %v898, %v907
        %v910 = vsel %vm392, %v872, 0
        %v913 = vsel %vm392, %v881, 0
        %v916 = vsel %vm392, %v890, 0
        %v919 = vsel %vm392, %v899, 0
        %v922 = vsel %vm392, %v908, 0
        %v925 = vsel %vm408, %v851, 0
        %927 = vmatprep.subr.bf16.mxu0 0
        %928 = vmatpush1.bf16.msra.mxu0 %v925
        %929 = vmatprep.subr.bf16.mxu0 0
        %930 = vmatpush1.bf16.msra.mxu0 0
        %931 = vmatprep.subr.bf16.mxu0 0
        %932 = vmatpush1.bf16.msra.mxu0 0
        %933 = vmatprep.subr.bf16.mxu0 0
        %934 = vmatpush1.bf16.msra.mxu0 0
        %935 = vmatprep.subr.bf16.mxu0 0
        %936 = vmatpush1.bf16.msra.mxu0 0
        %937 = vmatprep.subr.bf16.mxu0 0
        %938 = vmatpush1.bf16.msra.mxu0 0
        %939 = vmatprep.subr.bf16.mxu0 0
        %940 = vmatpush1.bf16.msra.mxu0 0
        %941 = vmatprep.subr.bf16.mxu0 0
        %942 = vmatpush1.bf16.msra.mxu0 0
        %943 = vmatprep.subr.bf16.mxu0 0
        %944 = vmatpush1.bf16.msra.mxu0 0
        %945 = vmatprep.subr.bf16.mxu0 0
        %946 = vmatpush1.bf16.msra.mxu0 0
        %947 = vmatprep.subr.bf16.mxu0 0
        %948 = vmatpush1.bf16.msra.mxu0 0
        %949 = vmatprep.subr.bf16.mxu0 0
        %950 = vmatpush1.bf16.msra.mxu0 0
        %951 = vmatprep.subr.bf16.mxu0 0
        %952 = vmatpush1.bf16.msra.mxu0 0
        %953 = vmatprep.subr.bf16.mxu0 0
        %954 = vmatpush1.bf16.msra.mxu0 0
        %955 = vmatprep.subr.bf16.mxu0 0
        %956 = vmatpush1.bf16.msra.mxu0 0
        %957 = vmatprep.subr.bf16.mxu0 0
        %958 = vmatpush1.bf16.msra.mxu0 0
        %959 = vmatprep.mubr.bf16.mxu0 0
        %960 = vmatmul.mubr.bf16.gmra.mrb[0].mxu0 %v910
        %v961 = vpop.f32.mrb[0].mxu0
        %v962 = vadd.f32 0.0, %v961
        %v963 = vpop.f32.mrb[0].mxu0
        %v964 = vpop.f32.mrb[0].mxu0
        %v965 = vadd.f32 0.0, %v964
        %v966 = vpop.f32.mrb[0].mxu0
        %967 = vmatprep.mubr.bf16.mxu0 0
        %968 = vmatmul.mubr.bf16.gmra.mrb[0].mxu0 %v913
        %v969 = vpop.f32.mrb[0].mxu0
        %v970 = vadd.f32 0.0, %v969
        %v971 = vpop.f32.mrb[0].mxu0
        %v972 = vpop.f32.mrb[0].mxu0
        %v973 = vadd.f32 0.0, %v972
        %v974 = vpop.f32.mrb[0].mxu0
        %975 = vmatprep.mubr.bf16.mxu0 0
        %976 = vmatmul.mubr.bf16.gmra.mrb[0].mxu0 %v916
        %v977 = vpop.f32.mrb[0].mxu0
        %v978 = vadd.f32 0.0, %v977
        %v979 = vpop.f32.mrb[0].mxu0
        %v980 = vpop.f32.mrb[0].mxu0
        %v981 = vadd.f32 0.0, %v980
        %v982 = vpop.f32.mrb[0].mxu0
        %983 = vmatprep.mubr.bf16.mxu0 0
        %984 = vmatmul.mubr.bf16.gmra.mrb[0].mxu0 %v919
        %v985 = vpop.f32.mrb[0].mxu0
        %v986 = vadd.f32 0.0, %v985
        %v987 = vpop.f32.mrb[0].mxu0
        %v988 = vpop.f32.mrb[0].mxu0
        %v989 = vadd.f32 0.0, %v988
        %v990 = vpop.f32.mrb[0].mxu0
        %991 = vmatprep.mubr.bf16.mxu0 0
        %992 = vmatmul.mubr.bf16.gmra.mrb[0].mxu0 %v922
        %v993 = vpop.f32.mrb[0].mxu0
        %v994 = vadd.f32 0.0, %v993
        %v995 = vpop.f32.mrb[0].mxu0
        %v996 = vpop.f32.mrb[0].mxu0
        %v997 = vadd.f32 0.0, %v996
        %v998 = vpop.f32.mrb[0].mxu0
        %999 = vdwg.mxu0
        %v1000 = vadd.f32 %v837, %v962
        %v1001 = vadd.f32 %v838, %v965
        %v1002 = vadd.f32 %v839, %v970
        %v1003 = vadd.f32 %v840, %v973
        %v1004 = vadd.f32 %v841, %v978
        %v1005 = vadd.f32 %v842, %v981
        %v1006 = vadd.f32 %v843, %v986
        %v1007 = vadd.f32 %v844, %v989
        %v1008 = vadd.f32 %v845, %v994
        %v1009 = vadd.f32 %v846, %v997
        %v1010 = vld [vmem:[%s283 + $0x4] sm:$0xc]
        %s1011 = sadd.s32 %s310, 5
        %s1012 = smul.addr %s1011, 2
        %s1013 = scalar_lea.vmem %s1, %s1012
        %v1014 = vld [vmem:[%s1013] sm:$0x3]
        %v1016 = vunpack.c.l.b16 %v1010
        %v1017 = vpack.c.b16 %v719, %v1016
        %vm1018 = vcmask 1045504
        %v1019 = vrot.slane %v1017, 2
        %v1020 = vrot.slane %v730, 2
        %v1021 = vsel %vm1018, %v1019, %v1020
        %v1022 = vrot.slane %v731, 2
        %v1023 = vsel %vm1018, %v1020, %v1022
        %v1024 = vrot.slane %v732, 2
        %v1025 = vsel %vm1018, %v1022, %v1024
        %v1026 = vrot.slane %v733, 2
        %v1027 = vsel %vm1018, %v1024, %v1026
        %v1028 = vrot.slane %v854, 2
        %v1029 = vsel %vm1018, %v1026, %v1028
        %v1031 = vsel %vm392, %v1021, 0
        %v1034 = vsel %vm392, %v1023, 0
        %v1037 = vsel %vm392, %v1025, 0
        %v1040 = vsel %vm392, %v1027, 0
        %v1043 = vsel %vm392, %v1029, 0
        %v1046 = vsel %vm408, %v1014, 0
        %1048 = vmatprep.subr.bf16.mxu0 0
        %1049 = vmatpush1.bf16.msra.mxu0 %v1046
        %1050 = vmatprep.subr.bf16.mxu0 0
        %1051 = vmatpush1.bf16.msra.mxu0 0
        %1052 = vmatprep.subr.bf16.mxu0 0
        %1053 = vmatpush1.bf16.msra.mxu0 0
        %1054 = vmatprep.subr.bf16.mxu0 0
        %1055 = vmatpush1.bf16.msra.mxu0 0
        %1056 = vmatprep.subr.bf16.mxu0 0
        %1057 = vmatpush1.bf16.msra.mxu0 0
        %1058 = vmatprep.subr.bf16.mxu0 0
        %1059 = vmatpush1.bf16.msra.mxu0 0
        %1060 = vmatprep.subr.bf16.mxu0 0
        %1061 = vmatpush1.bf16.msra.mxu0 0
        %1062 = vmatprep.subr.bf16.mxu0 0
        %1063 = vmatpush1.bf16.msra.mxu0 0
        %1064 = vmatprep.subr.bf16.mxu0 0
        %1065 = vmatpush1.bf16.msra.mxu0 0
        %1066 = vmatprep.subr.bf16.mxu0 0
        %1067 = vmatpush1.bf16.msra.mxu0 0
        %1068 = vmatprep.subr.bf16.mxu0 0
        %1069 = vmatpush1.bf16.msra.mxu0 0
        %1070 = vmatprep.subr.bf16.mxu0 0
        %1071 = vmatpush1.bf16.msra.mxu0 0
        %1072 = vmatprep.subr.bf16.mxu0 0
        %1073 = vmatpush1.bf16.msra.mxu0 0
        %1074 = vmatprep.subr.bf16.mxu0 0
        %1075 = vmatpush1.bf16.msra.mxu0 0
        %1076 = vmatprep.subr.bf16.mxu0 0
        %1077 = vmatpush1.bf16.msra.mxu0 0
        %1078 = vmatprep.subr.bf16.mxu0 0
        %1079 = vmatpush1.bf16.msra.mxu0 0
        %1080 = vmatprep.mubr.bf16.mxu0 0
        %1081 = vmatmul.mubr.bf16.gmra.mrb[0].mxu0 %v1031
        %v1082 = vpop.f32.mrb[0].mxu0
        %v1083 = vadd.f32 0.0, %v1082
        %v1084 = vpop.f32.mrb[0].mxu0
        %v1085 = vpop.f32.mrb[0].mxu0
        %v1086 = vadd.f32 0.0, %v1085
        %v1087 = vpop.f32.mrb[0].mxu0
        %1088 = vmatprep.mubr.bf16.mxu0 0
        %1089 = vmatmul.mubr.bf16.gmra.mrb[0].mxu0 %v1034
        %v1090 = vpop.f32.mrb[0].mxu0
        %v1091 = vadd.f32 0.0, %v1090
        %v1092 = vpop.f32.mrb[0].mxu0
        %v1093 = vpop.f32.mrb[0].mxu0
        %v1094 = vadd.f32 0.0, %v1093
        %v1095 = vpop.f32.mrb[0].mxu0
        %1096 = vmatprep.mubr.bf16.mxu0 0
        %1097 = vmatmul.mubr.bf16.gmra.mrb[0].mxu0 %v1037
        %v1098 = vpop.f32.mrb[0].mxu0
        %v1099 = vadd.f32 0.0, %v1098
        %v1100 = vpop.f32.mrb[0].mxu0
        %v1101 = vpop.f32.mrb[0].mxu0
        %v1102 = vadd.f32 0.0, %v1101
        %v1103 = vpop.f32.mrb[0].mxu0
        %1104 = vmatprep.mubr.bf16.mxu0 0
        %1105 = vmatmul.mubr.bf16.gmra.mrb[0].mxu0 %v1040
        %v1106 = vpop.f32.mrb[0].mxu0
        %v1107 = vadd.f32 0.0, %v1106
        %v1108 = vpop.f32.mrb[0].mxu0
        %v1109 = vpop.f32.mrb[0].mxu0
        %v1110 = vadd.f32 0.0, %v1109
        %v1111 = vpop.f32.mrb[0].mxu0
        %1112 = vmatprep.mubr.bf16.mxu0 0
        %1113 = vmatmul.mubr.bf16.gmra.mrb[0].mxu0 %v1043
        %v1114 = vpop.f32.mrb[0].mxu0
        %v1115 = vadd.f32 0.0, %v1114
        %v1116 = vpop.f32.mrb[0].mxu0
        %v1117 = vpop.f32.mrb[0].mxu0
        %v1118 = vadd.f32 0.0, %v1117
        %v1119 = vpop.f32.mrb[0].mxu0
        %1120 = vdwg.mxu0
        %v1121 = vadd.f32 %v1000, %v1083
        %v1122 = vadd.f32 %v1001, %v1086
        %v1123 = vadd.f32 %v1002, %v1091
        %v1124 = vadd.f32 %v1003, %v1094
        %v1125 = vadd.f32 %v1004, %v1099
        %v1126 = vadd.f32 %v1005, %v1102
        %v1127 = vadd.f32 %v1006, %v1107
        %v1128 = vadd.f32 %v1007, %v1110
        %v1129 = vadd.f32 %v1008, %v1115
        %v1130 = vadd.f32 %v1009, %v1118
        %v1131 = vld [vmem:[%s283 + $0x8] sm:$0xc]
        %v1132 = vld [vmem:[%s283 + $0xc] sm:$0xf]
        %v1133 = vld [vmem:[%s283 + $0x10] sm:$0xf]
        %v1134 = vld [vmem:[%s283 + $0x14] sm:$0xf]
        %v1135 = vld [vmem:[%s283 + $0x18] sm:$0xf]
        %v1136 = vld [vmem:[%s283 + $0x1c] sm:$0xf]
        %v1137 = vld [vmem:[%s283 + $0x20] sm:$0xf]
        %v1138 = vld [vmem:[%s283 + $0x24] sm:$0xf]
        %v1139 = vld [vmem:[%s283 + $0x28] sm:$0xf]
        %v1140 = vld [vmem:[%s283 + $0x2c] sm:$0xf]
        %v1141 = vld [vmem:[%s283 + $0x30] sm:$0x3]
        %s1142 = sadd.s32 %s310, 6
        %s1143 = smul.addr %s1142, 2
        %s1144 = scalar_lea.vmem %s1, %s1143
        %v1145 = vld [vmem:[%s1144] sm:$0x3]
        %v1157 = vunpack.c.l.b16 %v1131
        %v1158 = vunpack.c.l.b16 %v1132
        %v1159 = vunpack.c.l.b16 %v1133
        %v1160 = vunpack.c.l.b16 %v1134
        %v1161 = vunpack.c.l.b16 %v1135
        %v1162 = vunpack.c.l.b16 %v1136
        %v1163 = vunpack.c.l.b16 %v1137
        %v1164 = vunpack.c.l.b16 %v1138
        %v1165 = vunpack.c.l.b16 %v1139
        %v1166 = vunpack.c.l.b16 %v1140
        %v1167 = vunpack.c.l.b16 %v1141
        %v1168 = vpack.c.b16 %v1158, %v1157
        %v1169 = vpack.c.b16 %v1160, %v1159
        %v1170 = vpack.c.b16 %v1162, %v1161
        %v1171 = vpack.c.b16 %v1164, %v1163
        %v1172 = vpack.c.b16 %v1166, %v1165
        %v1173 = vpack.c.b16 %v1167, %v1167
        %v1174 = vrot.slane %v1168, 2
        %v1175 = vrot.slane %v1169, 2
        %v1176 = vsel %vm1018, %v1174, %v1175
        %v1177 = vrot.slane %v1170, 2
        %v1178 = vsel %vm1018, %v1175, %v1177
        %v1179 = vrot.slane %v1171, 2
        %v1180 = vsel %vm1018, %v1177, %v1179
        %v1181 = vrot.slane %v1172, 2
        %v1182 = vsel %vm1018, %v1179, %v1181
        %v1183 = vrot.slane %v1173, 2
        %v1184 = vsel %vm1018, %v1181, %v1183
        %v1186 = vsel %vm392, %v1176, 0
        %v1189 = vsel %vm392, %v1178, 0
        %v1192 = vsel %vm392, %v1180, 0
        %v1195 = vsel %vm392, %v1182, 0
        %v1198 = vsel %vm392, %v1184, 0
        %v1201 = vsel %vm408, %v1145, 0
        %1203 = vmatprep.subr.bf16.mxu0 0
        %1204 = vmatpush1.bf16.msra.mxu0 %v1201
        %1205 = vmatprep.subr.bf16.mxu0 0
        %1206 = vmatpush1.bf16.msra.mxu0 0
        %1207 = vmatprep.subr.bf16.mxu0 0
        %1208 = vmatpush1.bf16.msra.mxu0 0
        %1209 = vmatprep.subr.bf16.mxu0 0
        %1210 = vmatpush1.bf16.msra.mxu0 0
        %1211 = vmatprep.subr.bf16.mxu0 0
        %1212 = vmatpush1.bf16.msra.mxu0 0
        %1213 = vmatprep.subr.bf16.mxu0 0
        %1214 = vmatpush1.bf16.msra.mxu0 0
        %1215 = vmatprep.subr.bf16.mxu0 0
        %1216 = vmatpush1.bf16.msra.mxu0 0
        %1217 = vmatprep.subr.bf16.mxu0 0
        %1218 = vmatpush1.bf16.msra.mxu0 0
        %1219 = vmatprep.subr.bf16.mxu0 0
        %1220 = vmatpush1.bf16.msra.mxu0 0
        %1221 = vmatprep.subr.bf16.mxu0 0
        %1222 = vmatpush1.bf16.msra.mxu0 0
        %1223 = vmatprep.subr.bf16.mxu0 0
        %1224 = vmatpush1.bf16.msra.mxu0 0
        %1225 = vmatprep.subr.bf16.mxu0 0
        %1226 = vmatpush1.bf16.msra.mxu0 0
        %1227 = vmatprep.subr.bf16.mxu0 0
        %1228 = vmatpush1.bf16.msra.mxu0 0
        %1229 = vmatprep.subr.bf16.mxu0 0
        %1230 = vmatpush1.bf16.msra.mxu0 0
        %1231 = vmatprep.subr.bf16.mxu0 0
        %1232 = vmatpush1.bf16.msra.mxu0 0
        %1233 = vmatprep.subr.bf16.mxu0 0
        %1234 = vmatpush1.bf16.msra.mxu0 0
        %1235 = vmatprep.mubr.bf16.mxu0 0
        %1236 = vmatmul.mubr.bf16.gmra.mrb[0].mxu0 %v1186
        %v1237 = vpop.f32.mrb[0].mxu0
        %v1238 = vadd.f32 0.0, %v1237
        %v1239 = vpop.f32.mrb[0].mxu0
        %v1240 = vpop.f32.mrb[0].mxu0
        %v1241 = vadd.f32 0.0, %v1240
        %v1242 = vpop.f32.mrb[0].mxu0
        %1243 = vmatprep.mubr.bf16.mxu0 0
        %1244 = vmatmul.mubr.bf16.gmra.mrb[0].mxu0 %v1189
        %v1245 = vpop.f32.mrb[0].mxu0
        %v1246 = vadd.f32 0.0, %v1245
        %v1247 = vpop.f32.mrb[0].mxu0
        %v1248 = vpop.f32.mrb[0].mxu0
        %v1249 = vadd.f32 0.0, %v1248
        %v1250 = vpop.f32.mrb[0].mxu0
        %1251 = vmatprep.mubr.bf16.mxu0 0
        %1252 = vmatmul.mubr.bf16.gmra.mrb[0].mxu0 %v1192
        %v1253 = vpop.f32.mrb[0].mxu0
        %v1254 = vadd.f32 0.0, %v1253
        %v1255 = vpop.f32.mrb[0].mxu0
        %v1256 = vpop.f32.mrb[0].mxu0
        %v1257 = vadd.f32 0.0, %v1256
        %v1258 = vpop.f32.mrb[0].mxu0
        %1259 = vmatprep.mubr.bf16.mxu0 0
        %1260 = vmatmul.mubr.bf16.gmra.mrb[0].mxu0 %v1195
        %v1261 = vpop.f32.mrb[0].mxu0
        %v1262 = vadd.f32 0.0, %v1261
        %v1263 = vpop.f32.mrb[0].mxu0
        %v1264 = vpop.f32.mrb[0].mxu0
        %v1265 = vadd.f32 0.0, %v1264
        %v1266 = vpop.f32.mrb[0].mxu0
        %1267 = vmatprep.mubr.bf16.mxu0 0
        %1268 = vmatmul.mubr.bf16.gmra.mrb[0].mxu0 %v1198
        %v1269 = vpop.f32.mrb[0].mxu0
        %v1270 = vadd.f32 0.0, %v1269
        %v1271 = vpop.f32.mrb[0].mxu0
        %v1272 = vpop.f32.mrb[0].mxu0
        %v1273 = vadd.f32 0.0, %v1272
        %v1274 = vpop.f32.mrb[0].mxu0
        %1275 = vdwg.mxu0
        %v1276 = vadd.f32 %v1121, %v1238
        %v1277 = vadd.f32 %v1122, %v1241
        %v1278 = vadd.f32 %v1123, %v1246
        %v1279 = vadd.f32 %v1124, %v1249
        %v1280 = vadd.f32 %v1125, %v1254
        %v1281 = vadd.f32 %v1126, %v1257
        %v1282 = vadd.f32 %v1127, %v1262
        %v1283 = vadd.f32 %v1128, %v1265
        %v1284 = vadd.f32 %v1129, %v1270
        %v1285 = vadd.f32 %v1130, %v1273
        %v1286 = vld [vmem:[%s283 + $0x30] sm:$0x7]
        %s1287 = sadd.s32 %s310, 7
        %s1288 = smul.addr %s1287, 2
        %s1289 = scalar_lea.vmem %s1, %s1288
        %v1290 = vld [vmem:[%s1289] sm:$0x3]
        %v1292 = vunpack.c.l.b16 %v1286
        %v1293 = vpack.c.b16 %v1292, %v1292
        %vm1294 = vsmask.f32 5376
        %v1296 = vshrl.u32 %v1168, 16
        %v1298 = vrot.slane %v1296, 2
        %v1299 = vshll.u32 %v1168, 16
        %v1301 = vrot.slane %v1299, 3
        %v1302 = vor.u32 %v1298, %v1301
        %v1304 = vshrl.u32 %v1169, 16
        %v1306 = vrot.slane %v1304, 2
        %v1307 = vshll.u32 %v1169, 16
        %v1309 = vrot.slane %v1307, 3
        %v1310 = vor.u32 %v1306, %v1309
        %v1311 = vsel %vm1294, %v1302, %v1310
        %v1313 = vshrl.u32 %v1170, 16
        %v1315 = vrot.slane %v1313, 2
        %v1316 = vshll.u32 %v1170, 16
        %v1318 = vrot.slane %v1316, 3
        %v1319 = vor.u32 %v1315, %v1318
        %v1320 = vsel %vm1294, %v1310, %v1319
        %v1322 = vshrl.u32 %v1171, 16
        %v1324 = vrot.slane %v1322, 2
        %v1325 = vshll.u32 %v1171, 16
        %v1327 = vrot.slane %v1325, 3
        %v1328 = vor.u32 %v1324, %v1327
        %v1329 = vsel %vm1294, %v1319, %v1328
        %v1331 = vshrl.u32 %v1172, 16
        %v1333 = vrot.slane %v1331, 2
        %v1334 = vshll.u32 %v1172, 16
        %v1336 = vrot.slane %v1334, 3
        %v1337 = vor.u32 %v1333, %v1336
        %v1338 = vsel %vm1294, %v1328, %v1337
        %v1340 = vshrl.u32 %v1293, 16
        %v1342 = vrot.slane %v1340, 2
        %v1343 = vshll.u32 %v1293, 16
        %v1345 = vrot.slane %v1343, 3
        %v1346 = vor.u32 %v1342, %v1345
        %v1347 = vsel %vm1294, %v1337, %v1346
        %v1349 = vsel %vm392, %v1311, 0
        %v1352 = vsel %vm392, %v1320, 0
        %v1355 = vsel %vm392, %v1329, 0
        %v1358 = vsel %vm392, %v1338, 0
        %v1361 = vsel %vm392, %v1347, 0
        %v1364 = vsel %vm408, %v1290, 0
        %1366 = vmatprep.subr.bf16.mxu0 0
        %1367 = vmatpush1.bf16.msra.mxu0 %v1364
        %1368 = vmatprep.subr.bf16.mxu0 0
        %1369 = vmatpush1.bf16.msra.mxu0 0
        %1370 = vmatprep.subr.bf16.mxu0 0
        %1371 = vmatpush1.bf16.msra.mxu0 0
        %1372 = vmatprep.subr.bf16.mxu0 0
        %1373 = vmatpush1.bf16.msra.mxu0 0
        %1374 = vmatprep.subr.bf16.mxu0 0
        %1375 = vmatpush1.bf16.msra.mxu0 0
        %1376 = vmatprep.subr.bf16.mxu0 0
        %1377 = vmatpush1.bf16.msra.mxu0 0
        %1378 = vmatprep.subr.bf16.mxu0 0
        %1379 = vmatpush1.bf16.msra.mxu0 0
        %1380 = vmatprep.subr.bf16.mxu0 0
        %1381 = vmatpush1.bf16.msra.mxu0 0
        %1382 = vmatprep.subr.bf16.mxu0 0
        %1383 = vmatpush1.bf16.msra.mxu0 0
        %1384 = vmatprep.subr.bf16.mxu0 0
        %1385 = vmatpush1.bf16.msra.mxu0 0
        %1386 = vmatprep.subr.bf16.mxu0 0
        %1387 = vmatpush1.bf16.msra.mxu0 0
        %1388 = vmatprep.subr.bf16.mxu0 0
        %1389 = vmatpush1.bf16.msra.mxu0 0
        %1390 = vmatprep.subr.bf16.mxu0 0
        %1391 = vmatpush1.bf16.msra.mxu0 0
        %1392 = vmatprep.subr.bf16.mxu0 0
        %1393 = vmatpush1.bf16.msra.mxu0 0
        %1394 = vmatprep.subr.bf16.mxu0 0
        %1395 = vmatpush1.bf16.msra.mxu0 0
        %1396 = vmatprep.subr.bf16.mxu0 0
        %1397 = vmatpush1.bf16.msra.mxu0 0
        %1398 = vmatprep.mubr.bf16.mxu0 0
        %1399 = vmatmul.mubr.bf16.gmra.mrb[0].mxu0 %v1349
        %v1400 = vpop.f32.mrb[0].mxu0
        %v1401 = vadd.f32 0.0, %v1400
        %v1402 = vpop.f32.mrb[0].mxu0
        %v1403 = vpop.f32.mrb[0].mxu0
        %v1404 = vadd.f32 0.0, %v1403
        %v1405 = vpop.f32.mrb[0].mxu0
        %1406 = vmatprep.mubr.bf16.mxu0 0
        %1407 = vmatmul.mubr.bf16.gmra.mrb[0].mxu0 %v1352
        %v1408 = vpop.f32.mrb[0].mxu0
        %v1409 = vadd.f32 0.0, %v1408
        %v1410 = vpop.f32.mrb[0].mxu0
        %v1411 = vpop.f32.mrb[0].mxu0
        %v1412 = vadd.f32 0.0, %v1411
        %v1413 = vpop.f32.mrb[0].mxu0
        %1414 = vmatprep.mubr.bf16.mxu0 0
        %1415 = vmatmul.mubr.bf16.gmra.mrb[0].mxu0 %v1355
        %v1416 = vpop.f32.mrb[0].mxu0
        %v1417 = vadd.f32 0.0, %v1416
        %v1418 = vpop.f32.mrb[0].mxu0
        %v1419 = vpop.f32.mrb[0].mxu0
        %v1420 = vadd.f32 0.0, %v1419
        %v1421 = vpop.f32.mrb[0].mxu0
        %1422 = vmatprep.mubr.bf16.mxu0 0
        %1423 = vmatmul.mubr.bf16.gmra.mrb[0].mxu0 %v1358
        %v1424 = vpop.f32.mrb[0].mxu0
        %v1425 = vadd.f32 0.0, %v1424
        %v1426 = vpop.f32.mrb[0].mxu0
        %v1427 = vpop.f32.mrb[0].mxu0
        %v1428 = vadd.f32 0.0, %v1427
        %v1429 = vpop.f32.mrb[0].mxu0
        %1430 = vmatprep.mubr.bf16.mxu0 0
        %1431 = vmatmul.mubr.bf16.gmra.mrb[0].mxu0 %v1361
        %v1432 = vpop.f32.mrb[0].mxu0
        %v1433 = vadd.f32 0.0, %v1432
        %v1434 = vpop.f32.mrb[0].mxu0
        %v1435 = vpop.f32.mrb[0].mxu0
        %v1436 = vadd.f32 0.0, %v1435
        %v1437 = vpop.f32.mrb[0].mxu0
        %1438 = vdwg.mxu0
        %v1439 = vadd.f32 %v1276, %v1401
        %v1440 = vadd.f32 %v1277, %v1404
        %v1441 = vadd.f32 %v1278, %v1409
        %v1442 = vadd.f32 %v1279, %v1412
        %v1443 = vadd.f32 %v1280, %v1417
        %v1444 = vadd.f32 %v1281, %v1420
        %v1445 = vadd.f32 %v1282, %v1425
        %v1446 = vadd.f32 %v1283, %v1428
        %v1447 = vadd.f32 %v1284, %v1433
        %v1448 = vadd.f32 %v1285, %v1436
        %v1449 = vld [vmem:[%s283 + $0x8] sm:$0x8]
        %s1450 = sadd.s32 %s310, 8
        %s1451 = smul.addr %s1450, 2
        %s1452 = scalar_lea.vmem %s1, %s1451
        %v1453 = vld [vmem:[%s1452] sm:$0x3]
        %v1455 = vunpack.c.l.b16 %v1449
        %v1456 = vpack.c.b16 %v1158, %v1455
        %vm1457 = vcmask 1044480
        %v1458 = vrot.slane %v1456, 3
        %v1459 = vrot.slane %v1169, 3
        %v1460 = vsel %vm1457, %v1458, %v1459
        %v1461 = vrot.slane %v1170, 3
        %v1462 = vsel %vm1457, %v1459, %v1461
        %v1463 = vrot.slane %v1171, 3
        %v1464 = vsel %vm1457, %v1461, %v1463
        %v1465 = vrot.slane %v1172, 3
        %v1466 = vsel %vm1457, %v1463, %v1465
        %v1467 = vrot.slane %v1293, 3
        %v1468 = vsel %vm1457, %v1465, %v1467
        %v1470 = vsel %vm392, %v1460, 0
        %v1473 = vsel %vm392, %v1462, 0
        %v1476 = vsel %vm392, %v1464, 0
        %v1479 = vsel %vm392, %v1466, 0
        %v1482 = vsel %vm392, %v1468, 0
        %v1485 = vsel %vm408, %v1453, 0
        %1487 = vmatprep.subr.bf16.mxu0 0
        %1488 = vmatpush1.bf16.msra.mxu0 %v1485
        %1489 = vmatprep.subr.bf16.mxu0 0
        %1490 = vmatpush1.bf16.msra.mxu0 0
        %1491 = vmatprep.subr.bf16.mxu0 0
        %1492 = vmatpush1.bf16.msra.mxu0 0
        %1493 = vmatprep.subr.bf16.mxu0 0
        %1494 = vmatpush1.bf16.msra.mxu0 0
        %1495 = vmatprep.subr.bf16.mxu0 0
        %1496 = vmatpush1.bf16.msra.mxu0 0
        %1497 = vmatprep.subr.bf16.mxu0 0
        %1498 = vmatpush1.bf16.msra.mxu0 0
        %1499 = vmatprep.subr.bf16.mxu0 0
        %1500 = vmatpush1.bf16.msra.mxu0 0
        %1501 = vmatprep.subr.bf16.mxu0 0
        %1502 = vmatpush1.bf16.msra.mxu0 0
        %1503 = vmatprep.subr.bf16.mxu0 0
        %1504 = vmatpush1.bf16.msra.mxu0 0
        %1505 = vmatprep.subr.bf16.mxu0 0
        %1506 = vmatpush1.bf16.msra.mxu0 0
        %1507 = vmatprep.subr.bf16.mxu0 0
        %1508 = vmatpush1.bf16.msra.mxu0 0
        %1509 = vmatprep.subr.bf16.mxu0 0
        %1510 = vmatpush1.bf16.msra.mxu0 0
        %1511 = vmatprep.subr.bf16.mxu0 0
        %1512 = vmatpush1.bf16.msra.mxu0 0
        %1513 = vmatprep.subr.bf16.mxu0 0
        %1514 = vmatpush1.bf16.msra.mxu0 0
        %1515 = vmatprep.subr.bf16.mxu0 0
        %1516 = vmatpush1.bf16.msra.mxu0 0
        %1517 = vmatprep.subr.bf16.mxu0 0
        %1518 = vmatpush1.bf16.msra.mxu0 0
        %1519 = vmatprep.mubr.bf16.mxu0 0
        %1520 = vmatmul.mubr.bf16.gmra.mrb[0].mxu0 %v1470
        %v1521 = vpop.f32.mrb[0].mxu0
        %v1522 = vadd.f32 0.0, %v1521
        %v1523 = vpop.f32.mrb[0].mxu0
        %v1524 = vpop.f32.mrb[0].mxu0
        %v1525 = vadd.f32 0.0, %v1524
        %v1526 = vpop.f32.mrb[0].mxu0
        %1527 = vmatprep.mubr.bf16.mxu0 0
        %1528 = vmatmul.mubr.bf16.gmra.mrb[0].mxu0 %v1473
        %v1529 = vpop.f32.mrb[0].mxu0
        %v1530 = vadd.f32 0.0, %v1529
        %v1531 = vpop.f32.mrb[0].mxu0
        %v1532 = vpop.f32.mrb[0].mxu0
        %v1533 = vadd.f32 0.0, %v1532
        %v1534 = vpop.f32.mrb[0].mxu0
        %1535 = vmatprep.mubr.bf16.mxu0 0
        %1536 = vmatmul.mubr.bf16.gmra.mrb[0].mxu0 %v1476
        %v1537 = vpop.f32.mrb[0].mxu0
        %v1538 = vadd.f32 0.0, %v1537
        %v1539 = vpop.f32.mrb[0].mxu0
        %v1540 = vpop.f32.mrb[0].mxu0
        %v1541 = vadd.f32 0.0, %v1540
        %v1542 = vpop.f32.mrb[0].mxu0
        %1543 = vmatprep.mubr.bf16.mxu0 0
        %1544 = vmatmul.mubr.bf16.gmra.mrb[0].mxu0 %v1479
        %v1545 = vpop.f32.mrb[0].mxu0
        %v1546 = vadd.f32 0.0, %v1545
        %v1547 = vpop.f32.mrb[0].mxu0
        %v1548 = vpop.f32.mrb[0].mxu0
        %v1549 = vadd.f32 0.0, %v1548
        %v1550 = vpop.f32.mrb[0].mxu0
        %1551 = vmatprep.mubr.bf16.mxu0 0
        %1552 = vmatmul.mubr.bf16.gmra.mrb[0].mxu0 %v1482
        %v1553 = vpop.f32.mrb[0].mxu0
        %v1554 = vadd.f32 0.0, %v1553
        %v1555 = vpop.f32.mrb[0].mxu0
        %v1556 = vpop.f32.mrb[0].mxu0
        %v1557 = vadd.f32 0.0, %v1556
        %v1558 = vpop.f32.mrb[0].mxu0
        %1559 = vdwg.mxu0
        %v1560 = vadd.f32 %v1439, %v1522
        %v1561 = vadd.f32 %v1440, %v1525
        %v1562 = vadd.f32 %v1441, %v1530
        %v1563 = vadd.f32 %v1442, %v1533
        %v1564 = vadd.f32 %v1443, %v1538
        %v1565 = vadd.f32 %v1444, %v1541
        %v1566 = vadd.f32 %v1445, %v1546
        %v1567 = vadd.f32 %v1446, %v1549
        %v1568 = vadd.f32 %v1447, %v1554
        %v1569 = vadd.f32 %v1448, %v1557
        %v1570 = vld [vmem:[#allocation2] sm:$0xff]
        %v1571 = vld [vmem:[#allocation2 + $0x8] sm:$0xff]
        %v1572 = vld [vmem:[#allocation2 + $0x10] sm:$0xff]
        %v1573 = vld [vmem:[#allocation2 + $0x18] sm:$0xff]
        %v1574 = vld [vmem:[#allocation2 + $0x20] sm:$0xff]
        %v1575 = vld [vmem:[#allocation2 + $0x28] sm:$0xff]
        %v1576 = vld [vmem:[#allocation2 + $0x30] sm:$0xff]
        %v1577 = vld [vmem:[#allocation2 + $0x38] sm:$0xff]
        %v1578 = vld [vmem:[#allocation2 + $0x40] sm:$0xff]
        %v1579 = vld [vmem:[#allocation2 + $0x48] sm:$0xff]
        %v1580 = vadd.f32 %v1570, %v1560
        %v1581 = vadd.f32 %v1571, %v1561
        %v1582 = vadd.f32 %v1572, %v1562
        %v1583 = vadd.f32 %v1573, %v1563
        %v1584 = vadd.f32 %v1574, %v1564
        %v1585 = vadd.f32 %v1575, %v1565
        %v1586 = vadd.f32 %v1576, %v1566
        %v1587 = vadd.f32 %v1577, %v1567
        %v1588 = vadd.f32 %v1578, %v1568
        %v1589 = vadd.f32 %v1579, %v1569
        %1590 = vst [vmem:[#allocation2] sm:$0xff] %v1580
        %1591 = vst [vmem:[#allocation2 + $0x8] sm:$0xff] %v1581
        %1592 = vst [vmem:[#allocation2 + $0x10] sm:$0xff] %v1582
        %1593 = vst [vmem:[#allocation2 + $0x18] sm:$0xff] %v1583
        %1594 = vst [vmem:[#allocation2 + $0x20] sm:$0xff] %v1584
        %1595 = vst [vmem:[#allocation2 + $0x28] sm:$0xff] %v1585
        %1596 = vst [vmem:[#allocation2 + $0x30] sm:$0xff] %v1586
        %1597 = vst [vmem:[#allocation2 + $0x38] sm:$0xff] %v1587
        %1598 = vst [vmem:[#allocation2 + $0x40] sm:$0xff] %v1588
        %1599 = vst [vmem:[#allocation2 + $0x48] sm:$0xff] %v1589
        %p1600 = scmp.eq.s32.totalorder %s30, 2
        // Predicated region
        $region37: #{tpu_custom_call.1} parent=31 // pred_check
          %p1601 = pneg %p1600
        $region38: #{tpu_custom_call.1} parent=31 // pred_check_branch
          %1603 = sbr.rel (%p1601) target = $region40
        $region39: #{tpu_custom_call.1} parent=31 // pred_region
          %v1604 = vld [vmem:[#allocation2] sm:$0xff]
          %v1605 = vld [vmem:[#allocation2 + $0x8] sm:$0xff]
          %v1606 = vld [vmem:[#allocation2 + $0x10] sm:$0xff]
          %v1607 = vld [vmem:[#allocation2 + $0x18] sm:$0xff]
          %v1608 = vld [vmem:[#allocation2 + $0x20] sm:$0xff]
          %v1609 = vld [vmem:[#allocation2 + $0x28] sm:$0xff]
          %v1610 = vld [vmem:[#allocation2 + $0x30] sm:$0xff]
          %v1611 = vld [vmem:[#allocation2 + $0x38] sm:$0xff]
          %v1612 = vld [vmem:[#allocation2 + $0x40] sm:$0xff]
          %v1613 = vld [vmem:[#allocation2 + $0x48] sm:$0xff]
          %v1614 = vpack.c.bf16 %v1605, %v1604
          %v1615 = vpack.c.bf16 %v1607, %v1606
          %v1616 = vpack.c.bf16 %v1609, %v1608
          %v1617 = vpack.c.bf16 %v1611, %v1610
          %v1618 = vpack.c.bf16 %v1613, %v1612
          %v1624 = vunpack.c.l.b16 %v1614
          %v1625 = vunpack.c.h.b16 %v1614
          %v1626 = vunpack.c.l.b16 %v1615
          %v1627 = vunpack.c.h.b16 %v1615
          %v1628 = vunpack.c.l.b16 %v1616
          %v1629 = vunpack.c.h.b16 %v1616
          %v1630 = vunpack.c.l.b16 %v1617
          %v1631 = vunpack.c.h.b16 %v1617
          %v1632 = vunpack.c.l.b16 %v1618
          %v1633 = vunpack.c.h.b16 %v1618
          %v1634 = vpack.c.b16 %v1624, %v1624
          %v1635 = vpack.c.b16 %v1625, %v1625
          %v1636 = vpack.c.b16 %v1626, %v1626
          %v1637 = vpack.c.b16 %v1627, %v1627
          %v1638 = vpack.c.b16 %v1628, %v1628
          %v1639 = vpack.c.b16 %v1629, %v1629
          %v1640 = vpack.c.b16 %v1630, %v1630
          %v1641 = vpack.c.b16 %v1631, %v1631
          %v1642 = vpack.c.b16 %v1632, %v1632
          %v1643 = vpack.c.b16 %v1633, %v1633
          %1654 = vst [vmem:[%s261] sm:$0xf] %v1634
          %1655 = vst [vmem:[%s261 + $0x4] sm:$0xf] %v1635
          %1656 = vst [vmem:[%s261 + $0x8] sm:$0xf] %v1636
          %1657 = vst [vmem:[%s261 + $0xc] sm:$0xf] %v1637
          %1658 = vst [vmem:[%s261 + $0x10] sm:$0xf] %v1638
          %1659 = vst [vmem:[%s261 + $0x14] sm:$0xf] %v1639
          %1660 = vst [vmem:[%s261 + $0x18] sm:$0xf] %v1640
          %1661 = vst [vmem:[%s261 + $0x1c] sm:$0xf] %v1641
          %1662 = vst [vmem:[%s261 + $0x20] sm:$0xf] %v1642
          %1663 = vst [vmem:[%s261 + $0x24] sm:$0xf] %v1643
          %v1664 = vld [vmem:[%s2] sm:$0xff]
          %v1665 = vld [vmem:[%s2 + $0x8] sm:$0xff]
          %v1666 = vld [vmem:[%s2 + $0x10] sm:$0xff]
          %v1667 = vld [vmem:[%s2 + $0x18] sm:$0xff]
          %v1668 = vld [vmem:[%s2 + $0x20] sm:$0xff]
          %v1669 = vld [vmem:[%s2 + $0x28] sm:$0xff]
          %v1670 = vld [vmem:[%s2 + $0x30] sm:$0xff]
          %v1671 = vld [vmem:[%s2 + $0x38] sm:$0xff]
          %v1672 = vld [vmem:[%s2 + $0x40] sm:$0xff]
          %v1673 = vld [vmem:[%s2 + $0x48] sm:$0xff]
          %1675 = vset.pattern.permute.xlu0 0
          %1676 = vperm.xlu0 %1675, %v1664
          %v1677 = vpop.permute.xlu0 %1676
          %1680 = vset.pattern.permute.xlu0 0
          %1681 = vperm.xlu0 %1680, %v1665
          %v1682 = vpop.permute.xlu0 %1681
          %1685 = vset.pattern.permute.xlu0 0
          %1686 = vperm.xlu0 %1685, %v1666
          %v1687 = vpop.permute.xlu0 %1686
          %1690 = vset.pattern.permute.xlu0 0
          %1691 = vperm.xlu0 %1690, %v1667
          %v1692 = vpop.permute.xlu0 %1691
          %1695 = vset.pattern.permute.xlu0 0
          %1696 = vperm.xlu0 %1695, %v1668
          %v1697 = vpop.permute.xlu0 %1696
          %1700 = vset.pattern.permute.xlu0 0
          %1701 = vperm.xlu0 %1700, %v1669
          %v1702 = vpop.permute.xlu0 %1701
          %1705 = vset.pattern.permute.xlu0 0
          %1706 = vperm.xlu0 %1705, %v1670
          %v1707 = vpop.permute.xlu0 %1706
          %1710 = vset.pattern.permute.xlu0 0
          %1711 = vperm.xlu0 %1710, %v1671
          %v1712 = vpop.permute.xlu0 %1711
          %1715 = vset.pattern.permute.xlu0 0
          %1716 = vperm.xlu0 %1715, %v1672
          %v1717 = vpop.permute.xlu0 %1716
          %1720 = vset.pattern.permute.xlu0 0
          %1721 = vperm.xlu0 %1720, %v1673
          %v1722 = vpop.permute.xlu0 %1721
          %v1724 = vmul.f32 %v1604, %v1677
          %v1725 = vmul.f32 %v1605, %v1682
          %v1726 = vmul.f32 %v1606, %v1687
          %v1727 = vmul.f32 %v1607, %v1692
          %v1728 = vmul.f32 %v1608, %v1697
          %v1729 = vmul.f32 %v1609, %v1702
          %v1730 = vmul.f32 %v1610, %v1707
          %v1731 = vmul.f32 %v1611, %v1712
          %v1732 = vmul.f32 %v1612, %v1717
          %v1733 = vmul.f32 %v1613, %v1722
          %v1734 = vadd.f32 %v1724, %v1725
          %v1735 = vadd.f32 %v1734, %v1726
          %v1736 = vadd.f32 %v1735, %v1727
          %v1737 = vadd.f32 %v1736, %v1728
          %v1738 = vadd.f32 %v1737, %v1729
          %v1739 = vadd.f32 %v1738, %v1730
          %v1740 = vadd.f32 %v1739, %v1731
          %v1741 = vadd.f32 %v1740, %v1732
          %v1742 = vadd.f32 %v1741, %v1733
          %v1743 = vrot.slane %v1742, 4
          %v1744 = vadd.f32 %v1742, %v1743
          %v1745 = vrot.slane %v1744, 2
          %v1746 = vadd.f32 %v1744, %v1745
          %v1747 = vrot.slane %v1746, 1
          %v1748 = vadd.f32 %v1746, %v1747
          %1749 = vst [vmem:[%s267] sm:$0x1] %v1748
          %v1750 = vmul.f32 %v1604, %v1604
          %v1751 = vmul.f32 %v1605, %v1605
          %v1752 = vmul.f32 %v1606, %v1606
          %v1753 = vmul.f32 %v1607, %v1607
          %v1754 = vmul.f32 %v1608, %v1608
          %v1755 = vmul.f32 %v1609, %v1609
          %v1756 = vmul.f32 %v1610, %v1610
          %v1757 = vmul.f32 %v1611, %v1611
          %v1758 = vmul.f32 %v1612, %v1612
          %v1759 = vmul.f32 %v1613, %v1613
          %v1760 = vmul.f32 %v1750, %v1677
          %v1761 = vmul.f32 %v1751, %v1682
          %v1762 = vmul.f32 %v1752, %v1687
          %v1763 = vmul.f32 %v1753, %v1692
          %v1764 = vmul.f32 %v1754, %v1697
          %v1765 = vmul.f32 %v1755, %v1702
          %v1766 = vmul.f32 %v1756, %v1707
          %v1767 = vmul.f32 %v1757, %v1712
          %v1768 = vmul.f32 %v1758, %v1717
          %v1769 = vmul.f32 %v1759, %v1722
          %v1770 = vadd.f32 %v1760, %v1761
          %v1771 = vadd.f32 %v1770, %v1762
          %v1772 = vadd.f32 %v1771, %v1763
          %v1773 = vadd.f32 %v1772, %v1764
          %v1774 = vadd.f32 %v1773, %v1765
          %v1775 = vadd.f32 %v1774, %v1766
          %v1776 = vadd.f32 %v1775, %v1767
          %v1777 = vadd.f32 %v1776, %v1768
          %v1778 = vadd.f32 %v1777, %v1769
          %v1779 = vrot.slane %v1778, 4
          %v1780 = vadd.f32 %v1778, %v1779
          %v1781 = vrot.slane %v1780, 2
          %v1782 = vadd.f32 %v1780, %v1781
          %v1783 = vrot.slane %v1782, 1
          %v1784 = vadd.f32 %v1782, %v1783
          %1785 = vst [vmem:[%s273] sm:$0x1] %v1784
        $region40: #{tpu_custom_call.1} parent=31 // pred_fallthru
          _
        %s1786 = sand.u32 %s124, 1
        %s1787 = scalar_lea.sflag [#allocation4], %s1786
        %s1788 = sand.u32 %s124, 1
        %s1789 = smul.addr %s1788, 40
        %s1790 = scalar_lea.vmem [#allocation3], %s1789
        %s1791 = sand.u32 %s23, 1
        %s1792 = scalar_lea.sflag [#allocation6], %s1791
        %s1793 = sand.u32 %s152, 1
        %s1794 = scalar_lea.vmem [#allocation5], %s1793
        %s1795 = sand.u32 %s23, 1
        %s1796 = scalar_lea.sflag [#allocation6], %s1795
        %s1797 = sand.u32 %s180, 1
        %s1798 = scalar_lea.vmem [#allocation7], %s1797
        // Predicated region
        $region41: #{tpu_custom_call.1} parent=31 // pred_check
          %p1799 = pneg %p134
        $region42: #{tpu_custom_call.1} parent=31 // pred_check_branch
          %1801 = sbr.rel (%p1799) target = $region44
        $region43: #{tpu_custom_call.1} parent=31 // pred_region
          %s1803 = ssub.s32 640, 640
          %1804 = vsyncadd %s1787, %s1803
          %s1805 = smul.addr %s29, 10
          %s1806 = smul.addr %s28, 40
          %s1807 = sadd.s32 %s1805, %s1806
          %s1808 = smul.addr %s1807, 64
          %s1809 = scalar_lea.hbm %s3, %s1808
          %s1810 = sshll.u32 %s1790, 4
          %s1811 = int_to_ptr.vmem [resolvable:$true] %s1810
          %1816 = dma.vmem_to_hbm [thread:$0]  %s1811, 640, %s1809, %s1787, 64, 64, 4
        $region44: #{tpu_custom_call.1} parent=31 // pred_fallthru
          _
        // Predicated region
        $region45: #{tpu_custom_call.1} parent=31 // pred_check
          %p1817 = pneg %p162
        $region46: #{tpu_custom_call.1} parent=31 // pred_check_branch
          %1819 = sbr.rel (%p1817) target = $region48
        $region47: #{tpu_custom_call.1} parent=31 // pred_region
          %s1821 = ssub.s32 16, 16
          %1822 = vsyncadd %s1792, %s1821
          %s1823 = smul.addr %s28, 4
          %s1824 = sadd.s32 %s29, %s1823
          %s1825 = smul.addr %s1824, 16
          %s1826 = scalar_lea.hbm %s4, %s1825
          %s1828 = sshll.u32 %s1794, 4
          %s1829 = int_to_ptr.vmem [resolvable:$true] %s1828
          %1831 = dma.vmem_to_hbm [thread:$0]  %s1829, 16, %s1826, %s1792
        $region48: #{tpu_custom_call.1} parent=31 // pred_fallthru
          _
        // Predicated region
        $region49: #{tpu_custom_call.1} parent=31 // pred_check
          %p1832 = pneg %p190
        $region50: #{tpu_custom_call.1} parent=31 // pred_check_branch
          %1834 = sbr.rel (%p1832) target = $region52
        $region51: #{tpu_custom_call.1} parent=31 // pred_region
          %s1836 = ssub.s32 16, 16
          %1837 = vsyncadd %s1796, %s1836
          %s1838 = smul.addr %s28, 4
          %s1839 = sadd.s32 %s29, %s1838
          %s1840 = smul.addr %s1839, 16
          %s1841 = scalar_lea.hbm %s5, %s1840
          %s1843 = sshll.u32 %s1798, 4
          %s1844 = int_to_ptr.vmem [resolvable:$true] %s1843
          %1846 = dma.vmem_to_hbm [thread:$0]  %s1844, 16, %s1841, %s1796
        $region52: #{tpu_custom_call.1} parent=31 // pred_fallthru
          _
      $region32: #{tpu_custom_call.1} parent=5 // pred_fallthru
        _
      %p1847 = scmp.le.s32.totalorder 2, %s18
      // Predicated region
      $region53: #{tpu_custom_call.1} parent=5 // pred_check
        %p1848 = pneg %p1847
      $region54: #{tpu_custom_call.1} parent=5 // pred_check_branch
        %1850 = sbr.rel (%p1848) target = $region56
      $region55: #{tpu_custom_call.1} parent=5 // pred_region
        %s1851 = ssub.s32 %s18, 2
        // Predicated region
        $region57: #{tpu_custom_call.1} parent=55 // pred_check
          %p1852 = pneg %p140
        $region58: #{tpu_custom_call.1} parent=55 // pred_check_branch
          %1854 = sbr.rel (%p1852) target = $region60
        $region59: #{tpu_custom_call.1} parent=55 // pred_region
          %s1855 = sand.u32 %s125, 1
          %s1856 = scalar_lea.sflag [#allocation4], %s1855
          %s1857 = sand.u32 %s125, 1
          %s1858 = smul.addr %s1857, 40
          %s1859 = scalar_lea.vmem [#allocation3], %s1858
          %1860 = dma.done %s1856, 640
        $region60: #{tpu_custom_call.1} parent=55 // pred_fallthru
          _
        // Predicated region
        $region61: #{tpu_custom_call.1} parent=55 // pred_check
          %p1861 = pneg %p168
        $region62: #{tpu_custom_call.1} parent=55 // pred_check_branch
          %1863 = sbr.rel (%p1861) target = $region64
        $region63: #{tpu_custom_call.1} parent=55 // pred_region
          %s1864 = sand.u32 %s24, 1
          %s1865 = scalar_lea.sflag [#allocation6], %s1864
          %s1866 = sand.u32 %s153, 1
          %s1867 = scalar_lea.vmem [#allocation5], %s1866
          %1868 = dma.done %s1865, 16
        $region64: #{tpu_custom_call.1} parent=55 // pred_fallthru
          _
        // Predicated region
        $region65: #{tpu_custom_call.1} parent=55 // pred_check
          %p1869 = pneg %p196
        $region66: #{tpu_custom_call.1} parent=55 // pred_check_branch
          %1871 = sbr.rel (%p1869) target = $region68
        $region67: #{tpu_custom_call.1} parent=55 // pred_region
          %s1872 = sand.u32 %s24, 1
          %s1873 = scalar_lea.sflag [#allocation6], %s1872
          %s1874 = sand.u32 %s181, 1
          %s1875 = scalar_lea.vmem [#allocation7], %s1874
          %1876 = dma.done %s1873, 16
        $region68: #{tpu_custom_call.1} parent=55 // pred_fallthru
          _
      $region56: #{tpu_custom_call.1} parent=5 // pred_fallthru
        _
    $region6: #{tpu_custom_call.1} parent=1 // loop_footer
      %s22 = sadd.s32 1, %s18
    $region7: #{tpu_custom_call.1} parent=1 // loop_footer_branch
      %17 = sbr.rel target = $region3
    $region8: #{tpu_custom_call.1} parent=1 // loop_exit
      _
    %1877 = vsyncpa [#allocation4], 1
    %s1878 = scalar_lea.sflag [#allocation4], 1
    %1879 = vsyncpa %s1878, 1
    %1880 = vsyncpa [#allocation6], 1
    %s1881 = scalar_lea.sflag [#allocation6], 1
    %1882 = vsyncpa %s1881, 1

</llo_original>
